<compile_context>
chip_gen: v7x
topology: tpu7x:2x2x1
jax: 0.10.0
libtpu: 0.0.40
codegen_flags: <defaults>
</compile_context>

<pallas_src>
import functools

import numpy as np
import jax
import jax.numpy as jnp
from jax.experimental import pallas as pl
from jax.experimental.pallas import tpu as pltpu


# --------------------------- shared layout helpers ---------------------------

def _conv_layer_specs(hs, conv_shapes):
    """conv_shapes: [(K, Cin, Cout), ...] -> [(K, Cin, Cout, S_in, S_out), ...]."""
    specs, s = [], hs
    for K, Cin, Cout in conv_shapes:
        specs.append((K, Cin, Cout, s, s + K - 1))
        s += K - 1
    return specs


def _conv_buffer_layout(specs):
    """Row offsets of the packed conv-weight buffer (band matrices + bias rows)."""
    width = max(S_out * Cout for (K, Cin, Cout, S_in, S_out) in specs)
    mat_offs, r = [], 0
    for (K, Cin, Cout, S_in, S_out) in specs:
        rows, cols = S_in * Cin, S_out * Cout
        mat_offs.append((r, rows, cols))
        r += K * rows
    bias_offs = list(range(r, r + len(specs)))
    return mat_offs, bias_offs, r + len(specs), width


# ------------------------------ fused kernel --------------------------------

def _fused_model_kernel(x_ref, lin_ref, conv_ref, o_ref, *, dims):
    B, Din, HS, C1, K1, C2, K2, C3, K3 = dims
    specs = _conv_layer_specs(HS, ((K1, C1, C2), (K2, C2, C3), (K3, C3, 1)))
    mat_offs, bias_offs, _, _ = _conv_buffer_layout(specs)
    n_layers = len(specs)
    HSC = HS * C1                       # lanes per image row after the linear layer

    # ---- Stage 1: Linear + ReLU as one lane-dense MXU matmul ---------------
    w1 = lin_ref[0:Din, :]                               # (Din, HS*HS*C1)
    b1 = lin_ref[Din:Din + 1, :]                         # (1,   HS*HS*C1)
    a1 = jnp.dot(x_ref[...], w1, preferred_element_type=jnp.float32) + b1
    a1 = jnp.maximum(a1, 0.0)                            # (B, HS*HS*C1), lanes=(h,w,c)

    # ---- H-padded input of conv layer 1, assembled per batch ---------------
    K0 = specs[0][0]
    halo0 = jnp.zeros((K0 - 1, HSC), jnp.float32)
    Ps = [jnp.concatenate([halo0]
                          + [a1[b:b + 1, h * HSC:(h + 1) * HSC] for h in range(HS)]
                          + [halo0], axis=0)
          for b in range(B)]                             # each (HS + 2*(K0-1), HS*C1)

    # ---- stride-1 ConvTranspose2d layers: K banded matmuls each ------------
    outs = None
    for li, (K, Cin, Cout, S_in, S_out) in enumerate(specs):
        r0, rows, cols = mat_offs[li]
        accs = [None] * B
        for kh in range(K):
            band = conv_ref[r0 + kh * rows: r0 + (kh + 1) * rows, 0:cols]
            for b in range(B):
                contrib = jnp.dot(Ps[b][kh:kh + S_out, :], band,
                                  preferred_element_type=jnp.float32)
                accs[b] = contrib if kh == 0 else accs[b] + contrib
        brow = conv_ref[bias_offs[li]:bias_offs[li] + 1, 0:cols]
        ys = [accs[b] + brow for b in range(B)]
        if li + 1 < n_layers:
            ys = [jnp.maximum(y, 0.0) for y in ys]
            halo = jnp.zeros((specs[li + 1][0] - 1, cols), jnp.float32)
            Ps = [jnp.concatenate([halo, y, halo], axis=0) for y in ys]
        else:
            outs = ys                                    # each (S4, S4)

    o_ref[...] = jnp.stack(outs, axis=0).astype(o_ref.dtype)


def build_model_forward(dims):
    B, Din, HS, C1, K1, C2, K2, C3, K3 = dims
    S4 = HS + (K1 - 1) + (K2 - 1) + (K3 - 1)

    kernel = functools.partial(_fused_model_kernel, dims=dims)
    vmem = functools.partial(pl.BlockSpec, memory_space=pltpu.MemorySpace.VMEM)

    call = pl.pallas_call(
        kernel,
        out_shape=jax.ShapeDtypeStruct((B, S4, S4), jnp.float32),
        in_specs=[vmem(), vmem(), vmem()],
        out_specs=vmem(),
    )

    def forward(x, prep):
        out = call(x, prep["lin"], prep["conv"])
        return jnp.squeeze(out)          # matches torch .squeeze() (no-op for B=2)

    return jax.jit(forward)


# --------------------------- one-time param re-layout ------------------------

def _band_matrices(w, s_in):
    """M[kh][(wi*Cin+ci),(wo*Cout+co)] = w[K-1-kh, wo-wi, ci, co] (0 elsewhere)."""
    K, _, Cin, Cout = w.shape
    s_out = s_in + K - 1
    M = np.zeros((K, s_in * Cin, s_out * Cout), np.float32)
    for kh in range(K):
        for wi in range(s_in):
            for kw in range(K):
                wo = wi + kw
                M[kh, wi * Cin:(wi + 1) * Cin, wo * Cout:(wo + 1) * Cout] = w[K - 1 - kh, kw]
    return M


def prepare_params(params):
    """Host-side, one-time re-layout into two packed f32 buffers."""
    hc, hs = params["hidden_channel"], params["hidden_size"]
    w1 = np.asarray(params["w1"], np.float32)
    b1 = np.asarray(params["b1"], np.float32)
    din = w1.shape[0]

    # Linear columns are NCHW-flat (c,h,w) -> reorder to (h, w, c) so the
    # matmul output lanes are (h, w, c) and the conv layers see (w, c) lanes.
    w1f = w1.reshape(din, hc, hs, hs).transpose(0, 2, 3, 1).reshape(din, hs * hs * hc)
    b1f = b1.reshape(hc, hs, hs).transpose(1, 2, 0).reshape(1, hs * hs * hc)
    lin = np.concatenate([w1f, b1f], axis=0)                      # (Din+1, HS*HS*C1)

    conv_ws = [np.asarray(params[k], np.float32) for k in ("wc1", "wc2", "wc3")]
    conv_bs = [np.asarray(params[k], np.float32) for k in ("bc1", "bc2", "bc3")]
    conv_shapes = [(w.shape[0], w.shape[2], w.shape[3]) for w in conv_ws]
    specs = _conv_layer_specs(hs, conv_shapes)
    mat_offs, bias_offs, total_rows, width = _conv_buffer_layout(specs)

    buf = np.zeros((total_rows, width), np.float32)
    for w, (K, Cin, Cout, S_in, S_out), (r0, rows, cols) in zip(conv_ws, specs, mat_offs):
        M = _band_matrices(w, S_in)
        for kh in range(K):
            buf[r0 + kh * rows: r0 + (kh + 1) * rows, :cols] = M[kh]
    for b, (K, Cin, Cout, S_in, S_out), bo in zip(conv_bs, specs, bias_offs):
        buf[bo, :S_out * Cout] = np.tile(b, S_out)

    return {"lin": jnp.asarray(lin), "conv": jnp.asarray(buf)}


# ----------------------------- pure-JAX reference ----------------------------

def _convt_ref(x_nhwc, w, b):
    B, H, W, Cin = x_nhwc.shape
    KH, KW, _, Cout = w.shape
    out = jnp.zeros((B, H + KH - 1, W + KW - 1, Cout), jnp.float32)
    for kh in range(KH):
        for kw in range(KW):
            contrib = jnp.einsum("bhwc,cd->bhwd", x_nhwc, w[kh, kw])
            out = out.at[:, kh:kh + H, kw:kw + W, :].add(contrib)
    return out + b.reshape(1, 1, 1, Cout)


def model_forward_ref(x, params):
    B = x.shape[0]
    hc, hs = params["hidden_channel"], params["hidden_size"]
    y = jnp.maximum(x @ params["w1"] + params["b1"], 0.0)
    y = y.reshape(B, hc, hs, hs).transpose(0, 2, 3, 1)      # NCHW -> NHWC
    y = jnp.maximum(_convt_ref(y, params["wc1"], params["bc1"]), 0.0)
    y = jnp.maximum(_convt_ref(y, params["wc2"], params["bc2"]), 0.0)
    y = _convt_ref(y, params["wc3"], params["bc3"])
    return jnp.squeeze(y.transpose(0, 3, 1, 2))


# ------------------------------------ main -----------------------------------

if __name__ == "__main__":
    in_size, hidden_channel, hidden_size = 16, 4, 8
    kernel_1, hidden_channel_2 = 3, 8
    kernel_2, hidden_channel_3 = 3, 8
    kernel_3 = 3
    batch = 2

    key = jax.random.PRNGKey(0)
    ks = jax.random.split(key, 9)
    d_l1 = hidden_channel * hidden_size * hidden_size

    params = {
        "hidden_channel": hidden_channel,
        "hidden_size": hidden_size,
        "w1": jax.random.normal(ks[0], (in_size, d_l1), jnp.float32) * 0.05,
        "b1": jax.random.normal(ks[1], (d_l1,), jnp.float32) * 0.05,
        "wc1": jax.random.normal(ks[2], (kernel_1, kernel_1, hidden_channel, hidden_channel_2), jnp.float32) * 0.1,
        "bc1": jax.random.normal(ks[3], (hidden_channel_2,), jnp.float32) * 0.1,
        "wc2": jax.random.normal(ks[4], (kernel_2, kernel_2, hidden_channel_2, hidden_channel_3), jnp.float32) * 0.1,
        "bc2": jax.random.normal(ks[5], (hidden_channel_3,), jnp.float32) * 0.1,
        "wc3": jax.random.normal(ks[6], (kernel_3, kernel_3, hidden_channel_3, 1), jnp.float32) * 0.1,
        "bc3": jax.random.normal(ks[7], (1,), jnp.float32) * 0.1,
    }
    x = jax.random.normal(ks[8], (batch, in_size), jnp.float32)

    prep = prepare_params(params)
    dims = (batch, in_size, hidden_size, hidden_channel, kernel_1,
            hidden_channel_2, kernel_2, hidden_channel_3, kernel_3)
    forward = build_model_forward(dims)

    out = jax.block_until_ready(forward(x, prep))
    ref = jax.block_until_ready(model_forward_ref(x, params))

    expected_hw = hidden_size + (kernel_1 - 1) + (kernel_2 - 1) + (kernel_3 - 1)
    assert out.shape == (batch, expected_hw, expected_hw), out.shape
    assert jnp.allclose(out, ref, atol=1e-4, rtol=1e-4), float(jnp.max(jnp.abs(out - ref)))

    print("KERNEL_OK")
</pallas_src>

<mosaic_0001>
module attributes {stable_mosaic.version = 11 : i64} {
  func.func @_fused_model_kernel(%arg0: memref<2x16xf32, #tpu.memory_space<vmem>>, %arg1: memref<17x256xf32, #tpu.memory_space<vmem>>, %arg2: memref<627x96xf32, #tpu.memory_space<vmem>>, %arg3: memref<2x14x14xf32, #tpu.memory_space<vmem>>) attributes {dimension_semantics = [], scalar_prefetch = 0 : i64, scratch_operands = 0 : i64, tpu.core_type = #tpu.core_type<tc>} {
    %c0 = arith.constant 0 : index
    %c0_0 = arith.constant 0 : index
    %0 = vector.load %arg1[%c0, %c0_0] : memref<17x256xf32, #tpu.memory_space<vmem>>, vector<16x256xf32>
    %c16 = arith.constant 16 : index
    %c0_1 = arith.constant 0 : index
    %1 = vector.load %arg1[%c16, %c0_1] : memref<17x256xf32, #tpu.memory_space<vmem>>, vector<1x256xf32>
    %c0_2 = arith.constant 0 : index
    %c0_3 = arith.constant 0 : index
    %2 = vector.load %arg0[%c0_2, %c0_3] : memref<2x16xf32, #tpu.memory_space<vmem>>, vector<2x16xf32>
    %cst = arith.constant dense<0.000000e+00> : vector<2x256xf32>
    %3 = tpu.matmul %2, %0, %cst {dimension_numbers = #tpu.dot_dimension_numbers<[1], [0], [0], [1], [0, 0, 1, 1], [], []>} : vector<2x16xf32>, vector<16x256xf32>, vector<2x256xf32> -> vector<2x256xf32>
    %4 = vector.broadcast %1 : vector<1x256xf32> to vector<2x256xf32>
    %5 = arith.addf %3, %4 : vector<2x256xf32>
    %cst_4 = arith.constant 0.000000e+00 : f32
    %6 = vector.broadcast %cst_4 : f32 to vector<2x256xf32>
    %7 = arith.maximumf %5, %6 : vector<2x256xf32>
    %cst_5 = arith.constant 0.000000e+00 : f32
    %8 = vector.broadcast %cst_5 : f32 to vector<2x32xf32>
    %9 = vector.extract_strided_slice %7 {offsets = [0, 0], sizes = [1, 32], strides = [1, 1]} : vector<2x256xf32> to vector<1x32xf32>
    %10 = vector.extract_strided_slice %7 {offsets = [0, 32], sizes = [1, 32], strides = [1, 1]} : vector<2x256xf32> to vector<1x32xf32>
    %11 = vector.extract_strided_slice %7 {offsets = [0, 64], sizes = [1, 32], strides = [1, 1]} : vector<2x256xf32> to vector<1x32xf32>
    %12 = vector.extract_strided_slice %7 {offsets = [0, 96], sizes = [1, 32], strides = [1, 1]} : vector<2x256xf32> to vector<1x32xf32>
    %13 = vector.extract_strided_slice %7 {offsets = [0, 128], sizes = [1, 32], strides = [1, 1]} : vector<2x256xf32> to vector<1x32xf32>
    %14 = vector.extract_strided_slice %7 {offsets = [0, 160], sizes = [1, 32], strides = [1, 1]} : vector<2x256xf32> to vector<1x32xf32>
    %15 = vector.extract_strided_slice %7 {offsets = [0, 192], sizes = [1, 32], strides = [1, 1]} : vector<2x256xf32> to vector<1x32xf32>
    %16 = vector.extract_strided_slice %7 {offsets = [0, 224], sizes = [1, 32], strides = [1, 1]} : vector<2x256xf32> to vector<1x32xf32>
    %17 = tpu.concatenate %8, %9, %10, %11, %12, %13, %14, %15, %16, %8 in 0 : vector<2x32xf32>, vector<1x32xf32>, vector<1x32xf32>, vector<1x32xf32>, vector<1x32xf32>, vector<1x32xf32>, vector<1x32xf32>, vector<1x32xf32>, vector<1x32xf32>, vector<2x32xf32> -> vector<12x32xf32>
    %18 = vector.extract_strided_slice %7 {offsets = [1, 0], sizes = [1, 32], strides = [1, 1]} : vector<2x256xf32> to vector<1x32xf32>
    %19 = vector.extract_strided_slice %7 {offsets = [1, 32], sizes = [1, 32], strides = [1, 1]} : vector<2x256xf32> to vector<1x32xf32>
    %20 = vector.extract_strided_slice %7 {offsets = [1, 64], sizes = [1, 32], strides = [1, 1]} : vector<2x256xf32> to vector<1x32xf32>
    %21 = vector.extract_strided_slice %7 {offsets = [1, 96], sizes = [1, 32], strides = [1, 1]} : vector<2x256xf32> to vector<1x32xf32>
    %22 = vector.extract_strided_slice %7 {offsets = [1, 128], sizes = [1, 32], strides = [1, 1]} : vector<2x256xf32> to vector<1x32xf32>
    %23 = vector.extract_strided_slice %7 {offsets = [1, 160], sizes = [1, 32], strides = [1, 1]} : vector<2x256xf32> to vector<1x32xf32>
    %24 = vector.extract_strided_slice %7 {offsets = [1, 192], sizes = [1, 32], strides = [1, 1]} : vector<2x256xf32> to vector<1x32xf32>
    %25 = vector.extract_strided_slice %7 {offsets = [1, 224], sizes = [1, 32], strides = [1, 1]} : vector<2x256xf32> to vector<1x32xf32>
    %26 = tpu.concatenate %8, %18, %19, %20, %21, %22, %23, %24, %25, %8 in 0 : vector<2x32xf32>, vector<1x32xf32>, vector<1x32xf32>, vector<1x32xf32>, vector<1x32xf32>, vector<1x32xf32>, vector<1x32xf32>, vector<1x32xf32>, vector<1x32xf32>, vector<2x32xf32> -> vector<12x32xf32>
    %c0_6 = arith.constant 0 : index
    %c0_7 = arith.constant 0 : index
    %27 = vector.load %arg2[%c0_6, %c0_7] : memref<627x96xf32, #tpu.memory_space<vmem>>, vector<32x80xf32>
    %28 = vector.extract_strided_slice %17 {offsets = [0, 0], sizes = [10, 32], strides = [1, 1]} : vector<12x32xf32> to vector<10x32xf32>
    %cst_8 = arith.constant dense<0.000000e+00> : vector<10x80xf32>
    %29 = tpu.matmul %28, %27, %cst_8 {dimension_numbers = #tpu.dot_dimension_numbers<[1], [0], [0], [1], [0, 0, 1, 1], [], []>} : vector<10x32xf32>, vector<32x80xf32>, vector<10x80xf32> -> vector<10x80xf32>
    %30 = vector.extract_strided_slice %26 {offsets = [0, 0], sizes = [10, 32], strides = [1, 1]} : vector<12x32xf32> to vector<10x32xf32>
    %cst_9 = arith.constant dense<0.000000e+00> : vector<10x80xf32>
    %31 = tpu.matmul %30, %27, %cst_9 {dimension_numbers = #tpu.dot_dimension_numbers<[1], [0], [0], [1], [0, 0, 1, 1], [], []>} : vector<10x32xf32>, vector<32x80xf32>, vector<10x80xf32> -> vector<10x80xf32>
    %c32 = arith.constant 32 : index
    %c0_10 = arith.constant 0 : index
    %32 = vector.load %arg2[%c32, %c0_10] : memref<627x96xf32, #tpu.memory_space<vmem>>, vector<32x80xf32>
    %33 = vector.extract_strided_slice %17 {offsets = [1, 0], sizes = [10, 32], strides = [1, 1]} : vector<12x32xf32> to vector<10x32xf32>
    %cst_11 = arith.constant dense<0.000000e+00> : vector<10x80xf32>
    %34 = tpu.matmul %33, %32, %cst_11 {dimension_numbers = #tpu.dot_dimension_numbers<[1], [0], [0], [1], [0, 0, 1, 1], [], []>} : vector<10x32xf32>, vector<32x80xf32>, vector<10x80xf32> -> vector<10x80xf32>
    %35 = arith.addf %29, %34 : vector<10x80xf32>
    %36 = vector.extract_strided_slice %26 {offsets = [1, 0], sizes = [10, 32], strides = [1, 1]} : vector<12x32xf32> to vector<10x32xf32>
    %cst_12 = arith.constant dense<0.000000e+00> : vector<10x80xf32>
    %37 = tpu.matmul %36, %32, %cst_12 {dimension_numbers = #tpu.dot_dimension_numbers<[1], [0], [0], [1], [0, 0, 1, 1], [], []>} : vector<10x32xf32>, vector<32x80xf32>, vector<10x80xf32> -> vector<10x80xf32>
    %38 = arith.addf %31, %37 : vector<10x80xf32>
    %c64 = arith.constant 64 : index
    %c0_13 = arith.constant 0 : index
    %39 = vector.load %arg2[%c64, %c0_13] : memref<627x96xf32, #tpu.memory_space<vmem>>, vector<32x80xf32>
    %40 = vector.extract_strided_slice %17 {offsets = [2, 0], sizes = [10, 32], strides = [1, 1]} : vector<12x32xf32> to vector<10x32xf32>
    %cst_14 = arith.constant dense<0.000000e+00> : vector<10x80xf32>
    %41 = tpu.matmul %40, %39, %cst_14 {dimension_numbers = #tpu.dot_dimension_numbers<[1], [0], [0], [1], [0, 0, 1, 1], [], []>} : vector<10x32xf32>, vector<32x80xf32>, vector<10x80xf32> -> vector<10x80xf32>
    %42 = arith.addf %35, %41 : vector<10x80xf32>
    %43 = vector.extract_strided_slice %26 {offsets = [2, 0], sizes = [10, 32], strides = [1, 1]} : vector<12x32xf32> to vector<10x32xf32>
    %cst_15 = arith.constant dense<0.000000e+00> : vector<10x80xf32>
    %44 = tpu.matmul %43, %39, %cst_15 {dimension_numbers = #tpu.dot_dimension_numbers<[1], [0], [0], [1], [0, 0, 1, 1], [], []>} : vector<10x32xf32>, vector<32x80xf32>, vector<10x80xf32> -> vector<10x80xf32>
    %45 = arith.addf %38, %44 : vector<10x80xf32>
    %c624 = arith.constant 624 : index
    %c0_16 = arith.constant 0 : index
    %46 = vector.load %arg2[%c624, %c0_16] : memref<627x96xf32, #tpu.memory_space<vmem>>, vector<1x80xf32>
    %47 = vector.broadcast %46 : vector<1x80xf32> to vector<10x80xf32>
    %48 = arith.addf %42, %47 : vector<10x80xf32>
    %49 = vector.broadcast %46 : vector<1x80xf32> to vector<10x80xf32>
    %50 = arith.addf %45, %49 : vector<10x80xf32>
    %cst_17 = arith.constant 0.000000e+00 : f32
    %51 = vector.broadcast %cst_17 : f32 to vector<10x80xf32>
    %52 = arith.maximumf %48, %51 : vector<10x80xf32>
    %cst_18 = arith.constant 0.000000e+00 : f32
    %53 = vector.broadcast %cst_18 : f32 to vector<10x80xf32>
    %54 = arith.maximumf %50, %53 : vector<10x80xf32>
    %cst_19 = arith.constant 0.000000e+00 : f32
    %55 = vector.broadcast %cst_19 : f32 to vector<2x80xf32>
    %56 = tpu.concatenate %55, %52, %55 in 0 : vector<2x80xf32>, vector<10x80xf32>, vector<2x80xf32> -> vector<14x80xf32>
    %57 = tpu.concatenate %55, %54, %55 in 0 : vector<2x80xf32>, vector<10x80xf32>, vector<2x80xf32> -> vector<14x80xf32>
    %c96 = arith.constant 96 : index
    %c0_20 = arith.constant 0 : index
    %58 = vector.load %arg2[%c96, %c0_20] : memref<627x96xf32, #tpu.memory_space<vmem>>, vector<80x96xf32>
    %59 = vector.extract_strided_slice %56 {offsets = [0, 0], sizes = [12, 80], strides = [1, 1]} : vector<14x80xf32> to vector<12x80xf32>
    %cst_21 = arith.constant dense<0.000000e+00> : vector<12x96xf32>
    %60 = tpu.matmul %59, %58, %cst_21 {dimension_numbers = #tpu.dot_dimension_numbers<[1], [0], [0], [1], [0, 0, 1, 1], [], []>} : vector<12x80xf32>, vector<80x96xf32>, vector<12x96xf32> -> vector<12x96xf32>
    %61 = vector.extract_strided_slice %57 {offsets = [0, 0], sizes = [12, 80], strides = [1, 1]} : vector<14x80xf32> to vector<12x80xf32>
    %cst_22 = arith.constant dense<0.000000e+00> : vector<12x96xf32>
    %62 = tpu.matmul %61, %58, %cst_22 {dimension_numbers = #tpu.dot_dimension_numbers<[1], [0], [0], [1], [0, 0, 1, 1], [], []>} : vector<12x80xf32>, vector<80x96xf32>, vector<12x96xf32> -> vector<12x96xf32>
    %c176 = arith.constant 176 : index
    %c0_23 = arith.constant 0 : index
    %63 = vector.load %arg2[%c176, %c0_23] : memref<627x96xf32, #tpu.memory_space<vmem>>, vector<80x96xf32>
    %64 = vector.extract_strided_slice %56 {offsets = [1, 0], sizes = [12, 80], strides = [1, 1]} : vector<14x80xf32> to vector<12x80xf32>
    %cst_24 = arith.constant dense<0.000000e+00> : vector<12x96xf32>
    %65 = tpu.matmul %64, %63, %cst_24 {dimension_numbers = #tpu.dot_dimension_numbers<[1], [0], [0], [1], [0, 0, 1, 1], [], []>} : vector<12x80xf32>, vector<80x96xf32>, vector<12x96xf32> -> vector<12x96xf32>
    %66 = arith.addf %60, %65 : vector<12x96xf32>
    %67 = vector.extract_strided_slice %57 {offsets = [1, 0], sizes = [12, 80], strides = [1, 1]} : vector<14x80xf32> to vector<12x80xf32>
    %cst_25 = arith.constant dense<0.000000e+00> : vector<12x96xf32>
    %68 = tpu.matmul %67, %63, %cst_25 {dimension_numbers = #tpu.dot_dimension_numbers<[1], [0], [0], [1], [0, 0, 1, 1], [], []>} : vector<12x80xf32>, vector<80x96xf32>, vector<12x96xf32> -> vector<12x96xf32>
    %69 = arith.addf %62, %68 : vector<12x96xf32>
    %c256 = arith.constant 256 : index
    %c0_26 = arith.constant 0 : index
    %70 = vector.load %arg2[%c256, %c0_26] : memref<627x96xf32, #tpu.memory_space<vmem>>, vector<80x96xf32>
    %71 = vector.extract_strided_slice %56 {offsets = [2, 0], sizes = [12, 80], strides = [1, 1]} : vector<14x80xf32> to vector<12x80xf32>
    %cst_27 = arith.constant dense<0.000000e+00> : vector<12x96xf32>
    %72 = tpu.matmul %71, %70, %cst_27 {dimension_numbers = #tpu.dot_dimension_numbers<[1], [0], [0], [1], [0, 0, 1, 1], [], []>} : vector<12x80xf32>, vector<80x96xf32>, vector<12x96xf32> -> vector<12x96xf32>
    %73 = arith.addf %66, %72 : vector<12x96xf32>
    %74 = vector.extract_strided_slice %57 {offsets = [2, 0], sizes = [12, 80], strides = [1, 1]} : vector<14x80xf32> to vector<12x80xf32>
    %cst_28 = arith.constant dense<0.000000e+00> : vector<12x96xf32>
    %75 = tpu.matmul %74, %70, %cst_28 {dimension_numbers = #tpu.dot_dimension_numbers<[1], [0], [0], [1], [0, 0, 1, 1], [], []>} : vector<12x80xf32>, vector<80x96xf32>, vector<12x96xf32> -> vector<12x96xf32>
    %76 = arith.addf %69, %75 : vector<12x96xf32>
    %c625 = arith.constant 625 : index
    %c0_29 = arith.constant 0 : index
    %77 = vector.load %arg2[%c625, %c0_29] : memref<627x96xf32, #tpu.memory_space<vmem>>, vector<1x96xf32>
    %78 = vector.broadcast %77 : vector<1x96xf32> to vector<12x96xf32>
    %79 = arith.addf %73, %78 : vector<12x96xf32>
    %80 = vector.broadcast %77 : vector<1x96xf32> to vector<12x96xf32>
    %81 = arith.addf %76, %80 : vector<12x96xf32>
    %cst_30 = arith.constant 0.000000e+00 : f32
    %82 = vector.broadcast %cst_30 : f32 to vector<12x96xf32>
    %83 = arith.maximumf %79, %82 : vector<12x96xf32>
    %cst_31 = arith.constant 0.000000e+00 : f32
    %84 = vector.broadcast %cst_31 : f32 to vector<12x96xf32>
    %85 = arith.maximumf %81, %84 : vector<12x96xf32>
    %cst_32 = arith.constant 0.000000e+00 : f32
    %86 = vector.broadcast %cst_32 : f32 to vector<2x96xf32>
    %87 = tpu.concatenate %86, %83, %86 in 0 : vector<2x96xf32>, vector<12x96xf32>, vector<2x96xf32> -> vector<16x96xf32>
    %88 = tpu.concatenate %86, %85, %86 in 0 : vector<2x96xf32>, vector<12x96xf32>, vector<2x96xf32> -> vector<16x96xf32>
    %c336 = arith.constant 336 : index
    %c0_33 = arith.constant 0 : index
    %89 = vector.load %arg2[%c336, %c0_33] : memref<627x96xf32, #tpu.memory_space<vmem>>, vector<96x14xf32>
    %90 = vector.extract_strided_slice %87 {offsets = [0, 0], sizes = [14, 96], strides = [1, 1]} : vector<16x96xf32> to vector<14x96xf32>
    %cst_34 = arith.constant dense<0.000000e+00> : vector<14x14xf32>
    %91 = tpu.matmul %90, %89, %cst_34 {dimension_numbers = #tpu.dot_dimension_numbers<[1], [0], [0], [1], [0, 0, 1, 1], [], []>} : vector<14x96xf32>, vector<96x14xf32>, vector<14x14xf32> -> vector<14x14xf32>
    %92 = vector.extract_strided_slice %88 {offsets = [0, 0], sizes = [14, 96], strides = [1, 1]} : vector<16x96xf32> to vector<14x96xf32>
    %cst_35 = arith.constant dense<0.000000e+00> : vector<14x14xf32>
    %93 = tpu.matmul %92, %89, %cst_35 {dimension_numbers = #tpu.dot_dimension_numbers<[1], [0], [0], [1], [0, 0, 1, 1], [], []>} : vector<14x96xf32>, vector<96x14xf32>, vector<14x14xf32> -> vector<14x14xf32>
    %c432 = arith.constant 432 : index
    %c0_36 = arith.constant 0 : index
    %94 = vector.load %arg2[%c432, %c0_36] : memref<627x96xf32, #tpu.memory_space<vmem>>, vector<96x14xf32>
    %95 = vector.extract_strided_slice %87 {offsets = [1, 0], sizes = [14, 96], strides = [1, 1]} : vector<16x96xf32> to vector<14x96xf32>
    %cst_37 = arith.constant dense<0.000000e+00> : vector<14x14xf32>
    %96 = tpu.matmul %95, %94, %cst_37 {dimension_numbers = #tpu.dot_dimension_numbers<[1], [0], [0], [1], [0, 0, 1, 1], [], []>} : vector<14x96xf32>, vector<96x14xf32>, vector<14x14xf32> -> vector<14x14xf32>
    %97 = arith.addf %91, %96 : vector<14x14xf32>
    %98 = vector.extract_strided_slice %88 {offsets = [1, 0], sizes = [14, 96], strides = [1, 1]} : vector<16x96xf32> to vector<14x96xf32>
    %cst_38 = arith.constant dense<0.000000e+00> : vector<14x14xf32>
    %99 = tpu.matmul %98, %94, %cst_38 {dimension_numbers = #tpu.dot_dimension_numbers<[1], [0], [0], [1], [0, 0, 1, 1], [], []>} : vector<14x96xf32>, vector<96x14xf32>, vector<14x14xf32> -> vector<14x14xf32>
    %100 = arith.addf %93, %99 : vector<14x14xf32>
    %c528 = arith.constant 528 : index
    %c0_39 = arith.constant 0 : index
    %101 = vector.load %arg2[%c528, %c0_39] : memref<627x96xf32, #tpu.memory_space<vmem>>, vector<96x14xf32>
    %102 = vector.extract_strided_slice %87 {offsets = [2, 0], sizes = [14, 96], strides = [1, 1]} : vector<16x96xf32> to vector<14x96xf32>
    %cst_40 = arith.constant dense<0.000000e+00> : vector<14x14xf32>
    %103 = tpu.matmul %102, %101, %cst_40 {dimension_numbers = #tpu.dot_dimension_numbers<[1], [0], [0], [1], [0, 0, 1, 1], [], []>} : vector<14x96xf32>, vector<96x14xf32>, vector<14x14xf32> -> vector<14x14xf32>
    %104 = arith.addf %97, %103 : vector<14x14xf32>
    %105 = vector.extract_strided_slice %88 {offsets = [2, 0], sizes = [14, 96], strides = [1, 1]} : vector<16x96xf32> to vector<14x96xf32>
    %cst_41 = arith.constant dense<0.000000e+00> : vector<14x14xf32>
    %106 = tpu.matmul %105, %101, %cst_41 {dimension_numbers = #tpu.dot_dimension_numbers<[1], [0], [0], [1], [0, 0, 1, 1], [], []>} : vector<14x96xf32>, vector<96x14xf32>, vector<14x14xf32> -> vector<14x14xf32>
    %107 = arith.addf %100, %106 : vector<14x14xf32>
    %c626 = arith.constant 626 : index
    %c0_42 = arith.constant 0 : index
    %108 = vector.load %arg2[%c626, %c0_42] : memref<627x96xf32, #tpu.memory_space<vmem>>, vector<1x14xf32>
    %109 = vector.broadcast %108 : vector<1x14xf32> to vector<14x14xf32>
    %110 = arith.addf %104, %109 : vector<14x14xf32>
    %111 = vector.broadcast %108 : vector<1x14xf32> to vector<14x14xf32>
    %112 = arith.addf %107, %111 : vector<14x14xf32>
    %113 = vector.shape_cast %110 : vector<14x14xf32> to vector<1x14x14xf32>
    %114 = vector.shape_cast %112 : vector<14x14xf32> to vector<1x14x14xf32>
    %115 = tpu.concatenate %113, %114 in 0 : vector<1x14x14xf32>, vector<1x14x14xf32> -> vector<2x14x14xf32>
    %c0_43 = arith.constant 0 : index
    %c0_44 = arith.constant 0 : index
    %c0_45 = arith.constant 0 : index
    %116 = vector.load %arg3[%c0_43, %c0_44, %c0_45] : memref<2x14x14xf32, #tpu.memory_space<vmem>>, vector<2x14x14xf32>
    tpu.vector_store %arg3[%c0_43, %c0_44, %c0_45], %115 {strides = array<i32>} : memref<2x14x14xf32, #tpu.memory_space<vmem>>, vector<2x14x14xf32>,
    return
  }
}

</mosaic_0001>

<llo_original>
// kernel: forward.1
$region0: #{forward.1}
  #allocation0 [shape = 'u32[]', space=smem, size = 0x4, offset = 0x4, fixed_abs, tag = 'smem constant byte address 0x4 - core index']
  #allocation1 [shape = 'u32[144,128]{1,0:T(1,128)}', space=vmem, size = 0x12000, scoped, tag = 'internal scratch']
  %s0 = inlined_call_operand.vmem [shape: f32[2,16], index: 0, kind: input, shape index: {}]
  %s1 = inlined_call_operand.vmem [shape: f32[17,256], index: 1, kind: input, shape index: {}]
  %s2 = inlined_call_operand.vmem [shape: f32[627,96], index: 2, kind: input, shape index: {}]
  %s3 = inlined_call_operand.vmem [shape: f32[2,14,14], index: 3, kind: output, shape index: {}]
  %s4 = sld [smem:[#allocation0]]
  $region22: #{forward.1} parent=0
    _
  %s6 = ssub.s32 1, %s4
  %s7 = scalar_select 0, %s6, %s4
  // Predicated region
  $region2: #{forward.1} parent=0 // pred_check
    _
  $region3: #{forward.1} parent=0 // pred_check_branch
    %9 = sbr.rel (0) target = $region5
  $region4: #{forward.1} parent=0 // pred_region
    _
  $region5: #{forward.1} parent=0 // pred_fallthru
    _
  // Predicated region
  $region6: #{forward.1} parent=0 // pred_check
    _
  $region7: #{forward.1} parent=0 // pred_check_branch
    %11 = sbr.rel (0) target = $region9
  $region8: #{forward.1} parent=0 // pred_region
    _
  $region9: #{forward.1} parent=0 // pred_fallthru
    _
  // Predicated region
  $region10: #{forward.1} parent=0 // pred_check
    _
  $region11: #{forward.1} parent=0 // pred_check_branch
    %13 = sbr.rel (0) target = $region13
  $region12: #{forward.1} parent=0 // pred_region
    _
  $region13: #{forward.1} parent=0 // pred_fallthru
    _
  %v14 = vld [vmem:[%s1] sm:$0xff]
  %v15 = vld [vmem:[%s1 + $0x8] sm:$0xff]
  %v16 = vld [vmem:[%s1 + $0x10] sm:$0xff]
  %v17 = vld [vmem:[%s1 + $0x18] sm:$0xff]
  %s18 = scalar_lea.vmem %s1, 32
  %v19 = vld [vmem:[%s18] ss:$8 sm:$0x3]
  %v20 = vld [vmem:[%s0] sm:$0x3]
  %v22 = vlaneseq
  %v23 = vshrl.u32 %v22, 7
  %v24 = vsub.s32 0, %v23
  %v25 = vrot.slane %v19, %v24
  %v26 = vlaneseq
  %v27 = vshrl.u32 %v26, 7
  %v28 = vsub.s32 1, %v27
  %v29 = vrot.slane %v19, %v28
  %vm32 = vcmask 130048
  %v34 = vsel %vm32, %v20, 0
  %36 = vmatprep.subr.mxu0 %v15
  %37 = vmatpush1.msra.mxu0 %v14
  %38 = vmatprep.subr.mxu0 %v17
  %39 = vmatpush1.msra.mxu0 %v16
  %40 = vmatprep.subr.mxu0 0.0
  %41 = vmatpush1.msra.mxu0 0.0
  %42 = vmatprep.subr.mxu0 0.0
  %43 = vmatpush1.msra.mxu0 0.0
  %44 = vmatprep.subr.mxu0 0.0
  %45 = vmatpush1.msra.mxu0 0.0
  %46 = vmatprep.subr.mxu0 0.0
  %47 = vmatpush1.msra.mxu0 0.0
  %48 = vmatprep.subr.mxu0 0.0
  %49 = vmatpush1.msra.mxu0 0.0
  %50 = vmatprep.subr.mxu0 0.0
  %51 = vmatpush1.msra.mxu0 0.0
  %52 = vmatprep.subr.mxu0 0.0
  %53 = vmatpush1.msra.mxu0 0.0
  %54 = vmatprep.subr.mxu0 0.0
  %55 = vmatpush1.msra.mxu0 0.0
  %56 = vmatprep.subr.mxu0 0.0
  %57 = vmatpush1.msra.mxu0 0.0
  %58 = vmatprep.subr.mxu0 0.0
  %59 = vmatpush1.msra.mxu0 0.0
  %60 = vmatprep.subr.mxu0 0.0
  %61 = vmatpush1.msra.mxu0 0.0
  %62 = vmatprep.subr.mxu0 0.0
  %63 = vmatpush1.msra.mxu0 0.0
  %64 = vmatprep.subr.mxu0 0.0
  %65 = vmatpush1.msra.mxu0 0.0
  %66 = vmatprep.subr.mxu0 0.0
  %67 = vmatpush1.msra.mxu0 0.0
  %68 = vmatprep.subr.mxu0 0.0
  %69 = vmatpush1.msra.mxu0 0.0
  %70 = vmatprep.subr.mxu0 0.0
  %71 = vmatpush1.msra.mxu0 0.0
  %72 = vmatprep.subr.mxu0 0.0
  %73 = vmatpush1.msra.mxu0 0.0
  %74 = vmatprep.subr.mxu0 0.0
  %75 = vmatpush1.msra.mxu0 0.0
  %76 = vmatprep.subr.mxu0 0.0
  %77 = vmatpush1.msra.mxu0 0.0
  %78 = vmatprep.subr.mxu0 0.0
  %79 = vmatpush1.msra.mxu0 0.0
  %80 = vmatprep.subr.mxu0 0.0
  %81 = vmatpush1.msra.mxu0 0.0
  %82 = vmatprep.subr.mxu0 0.0
  %83 = vmatpush1.msra.mxu0 0.0
  %84 = vmatprep.subr.mxu0 0.0
  %85 = vmatpush1.msra.mxu0 0.0
  %86 = vmatprep.subr.mxu0 0.0
  %87 = vmatpush1.msra.mxu0 0.0
  %88 = vmatprep.subr.mxu0 0.0
  %89 = vmatpush1.msra.mxu0 0.0
  %90 = vmatprep.subr.mxu0 0.0
  %91 = vmatpush1.msra.mxu0 0.0
  %92 = vmatprep.subr.mxu0 0.0
  %93 = vmatpush1.msra.mxu0 0.0
  %94 = vmatprep.subr.mxu0 0.0
  %95 = vmatpush1.msra.mxu0 0.0
  %96 = vmatprep.subr.mxu0 0.0
  %97 = vmatpush1.msra.mxu0 0.0
  %98 = vmatprep.subr.mxu0 0.0
  %99 = vmatpush1.msra.mxu0 0.0
  %100 = vmatprep.mubr.f32.mxu0 0.0
  %101 = vmatmul.mubr.f32.gmra.mrb[0].mxu0 %v34
  %v102 = vpop.f32.mrb[0].mxu0
  %v103 = vadd.f32 %v25, %v102
  %v104 = vpop.f32.mrb[0].mxu0
  %v105 = vadd.f32 %v29, %v104
  %106 = vdwg.mxu0
  %v107 = vmax.f32 %v103, 0.0
  %v108 = vmax.f32 %v105, 0.0
  %v110 = vrot.slane %v107, 6
  %v112 = vrot.slane %v107, 5
  %113 = vrot.lane.b32.xlu0 %v112, 96
  %v114 = vpop.permute.xlu0 %113
  %v116 = vrot.slane %v107, 4
  %117 = vrot.lane.b32.xlu0 %v116, 64
  %v118 = vpop.permute.xlu0 %117
  %v120 = vrot.slane %v107, 3
  %121 = vrot.lane.b32.xlu0 %v120, 32
  %v122 = vpop.permute.xlu0 %121
  %v125 = vrot.slane %v108, 2
  %v127 = vrot.slane %v108, 1
  %128 = vrot.lane.b32.xlu0 %v127, 96
  %v129 = vpop.permute.xlu0 %128
  %131 = vrot.lane.b32.xlu0 %v108, 64
  %v132 = vpop.permute.xlu0 %131
  %v134 = vrot.slane %v108, 7
  %135 = vrot.lane.b32.xlu0 %v134, 32
  %v136 = vpop.permute.xlu0 %135
  %vm138 = vcmask 1041408
  %v139 = vsel %vm138, 0.0, %v110
  %vm140 = vcmask 1042432
  %v141 = vsel %vm140, %v139, %v114
  %vm142 = vcmask 1043456
  %v143 = vsel %vm142, %v141, %v118
  %vm144 = vcmask 1044480
  %v145 = vsel %vm144, %v143, %v122
  %vm146 = vcmask 1045504
  %v147 = vsel %vm146, %v145, %v125
  %vm148 = vcmask 1046528
  %v149 = vsel %vm148, %v147, %v129
  %vm150 = vcmask 1040384
  %v151 = vsel %vm150, %v132, %v136
  %v152 = vsel %vm138, %v151, 0.0
  %v153 = vrot.slane %v107, 7
  %155 = vrot.lane.b32.xlu0 %v110, 96
  %v156 = vpop.permute.xlu0 %155
  %158 = vrot.lane.b32.xlu0 %v112, 64
  %v159 = vpop.permute.xlu0 %158
  %161 = vrot.lane.b32.xlu0 %v116, 32
  %v162 = vpop.permute.xlu0 %161
  %v164 = vrot.slane %v108, 3
  %166 = vrot.lane.b32.xlu0 %v125, 96
  %v167 = vpop.permute.xlu0 %166
  %169 = vrot.lane.b32.xlu0 %v127, 64
  %v170 = vpop.permute.xlu0 %169
  %172 = vrot.lane.b32.xlu0 %v108, 32
  %v173 = vpop.permute.xlu0 %172
  %v175 = vsel %vm138, 0.0, %v153
  %v176 = vsel %vm140, %v175, %v156
  %v177 = vsel %vm142, %v176, %v159
  %v178 = vsel %vm144, %v177, %v162
  %v179 = vsel %vm146, %v178, %v164
  %v180 = vsel %vm148, %v179, %v167
  %v181 = vsel %vm150, %v170, %v173
  %v182 = vsel %vm138, %v181, 0.0
  %v183 = vld [vmem:[%s2] sm:$0xff]
  %v184 = vld [vmem:[%s2 + $0x8] sm:$0xff]
  %v185 = vld [vmem:[%s2 + $0x10] sm:$0xff]
  %v186 = vld [vmem:[%s2 + $0x18] sm:$0xff]
  %v187 = vld [vmem:[%s2 + $0x20] sm:$0xff]
  %v188 = vld [vmem:[%s2 + $0x28] sm:$0xff]
  %v189 = vld [vmem:[%s2 + $0x30] sm:$0xff]
  %v190 = vld [vmem:[%s2 + $0x38] sm:$0xff]
  %v193 = vrot.slane %v149, 1
  %v194 = vrot.slane %v152, 1
  %v195 = vsel %vm148, %v193, %v194
  %vm196 = vcmask 261120
  %v197 = vsel %vm196, %v195, 0
  %v199 = vsel %vm196, %v194, 0
  %201 = vmatprep.subr.mxu0 0.0
  %202 = vmatpush1.msra.mxu0 %v187
  %203 = vmatprep.subr.mxu0 0.0
  %204 = vmatpush1.msra.mxu0 %v188
  %205 = vmatprep.subr.mxu0 0.0
  %206 = vmatpush1.msra.mxu0 %v189
  %207 = vmatprep.subr.mxu0 0.0
  %208 = vmatpush1.msra.mxu0 %v190
  %209 = vmatprep.subr.mxu0 0.0
  %210 = vmatpush1.msra.mxu0 0.0
  %211 = vmatprep.subr.mxu0 0.0
  %212 = vmatpush1.msra.mxu0 0.0
  %213 = vmatprep.subr.mxu0 0.0
  %214 = vmatpush1.msra.mxu0 0.0
  %215 = vmatprep.subr.mxu0 0.0
  %216 = vmatpush1.msra.mxu0 0.0
  %217 = vmatprep.subr.mxu0 0.0
  %218 = vmatpush1.msra.mxu0 0.0
  %219 = vmatprep.subr.mxu0 0.0
  %220 = vmatpush1.msra.mxu0 0.0
  %221 = vmatprep.subr.mxu0 0.0
  %222 = vmatpush1.msra.mxu0 0.0
  %223 = vmatprep.subr.mxu0 0.0
  %224 = vmatpush1.msra.mxu0 0.0
  %225 = vmatprep.subr.mxu0 0.0
  %226 = vmatpush1.msra.mxu0 0.0
  %227 = vmatprep.subr.mxu0 0.0
  %228 = vmatpush1.msra.mxu0 0.0
  %229 = vmatprep.subr.mxu0 0.0
  %230 = vmatpush1.msra.mxu0 0.0
  %231 = vmatprep.subr.mxu0 0.0
  %232 = vmatpush1.msra.mxu0 0.0
  %233 = vmatprep.subr.mxu0 0.0
  %234 = vmatpush1.msra.mxu0 0.0
  %235 = vmatprep.subr.mxu0 0.0
  %236 = vmatpush1.msra.mxu0 0.0
  %237 = vmatprep.subr.mxu0 0.0
  %238 = vmatpush1.msra.mxu0 0.0
  %239 = vmatprep.subr.mxu0 0.0
  %240 = vmatpush1.msra.mxu0 0.0
  %241 = vmatprep.subr.mxu0 0.0
  %242 = vmatpush1.msra.mxu0 0.0
  %243 = vmatprep.subr.mxu0 0.0
  %244 = vmatpush1.msra.mxu0 0.0
  %245 = vmatprep.subr.mxu0 0.0
  %246 = vmatpush1.msra.mxu0 0.0
  %247 = vmatprep.subr.mxu0 0.0
  %248 = vmatpush1.msra.mxu0 0.0
  %249 = vmatprep.subr.mxu0 0.0
  %250 = vmatpush1.msra.mxu0 0.0
  %251 = vmatprep.subr.mxu0 0.0
  %252 = vmatpush1.msra.mxu0 0.0
  %253 = vmatprep.subr.mxu0 0.0
  %254 = vmatpush1.msra.mxu0 0.0
  %255 = vmatprep.subr.mxu0 0.0
  %256 = vmatpush1.msra.mxu0 0.0
  %257 = vmatprep.subr.mxu0 0.0
  %258 = vmatpush1.msra.mxu0 0.0
  %259 = vmatprep.subr.mxu0 0.0
  %260 = vmatpush1.msra.mxu0 0.0
  %261 = vmatprep.subr.mxu0 0.0
  %262 = vmatpush1.msra.mxu0 0.0
  %263 = vmatprep.subr.mxu0 0.0
  %264 = vmatpush1.msra.mxu0 0.0
  %265 = vmatprep.mubr.f32.mxu0 0.0
  %266 = vmatmul.mubr.f32.gmra.mrb[0].mxu0 %v197
  %v267 = vpop.f32.mrb[0].mxu0
  %v268 = vadd.f32 0.0, %v267
  %v269 = vpop.f32.mrb[0].mxu0
  %270 = vmatprep.mubr.f32.mxu0 0.0
  %271 = vmatmul.mubr.f32.gmra.mrb[0].mxu0 %v199
  %v272 = vpop.f32.mrb[0].mxu0
  %v273 = vadd.f32 0.0, %v272
  %v274 = vpop.f32.mrb[0].mxu0
  %275 = vdwg.mxu0
  %v276 = vsel %vm196, %v149, 0
  %v278 = vsel %vm196, %v152, 0
  %280 = vmatprep.subr.mxu0 0.0
  %281 = vmatpush1.msra.mxu0 %v183
  %282 = vmatprep.subr.mxu0 0.0
  %283 = vmatpush1.msra.mxu0 %v184
  %284 = vmatprep.subr.mxu0 0.0
  %285 = vmatpush1.msra.mxu0 %v185
  %286 = vmatprep.subr.mxu0 0.0
  %287 = vmatpush1.msra.mxu0 %v186
  %288 = vmatprep.subr.mxu0 0.0
  %289 = vmatpush1.msra.mxu0 0.0
  %290 = vmatprep.subr.mxu0 0.0
  %291 = vmatpush1.msra.mxu0 0.0
  %292 = vmatprep.subr.mxu0 0.0
  %293 = vmatpush1.msra.mxu0 0.0
  %294 = vmatprep.subr.mxu0 0.0
  %295 = vmatpush1.msra.mxu0 0.0
  %296 = vmatprep.subr.mxu0 0.0
  %297 = vmatpush1.msra.mxu0 0.0
  %298 = vmatprep.subr.mxu0 0.0
  %299 = vmatpush1.msra.mxu0 0.0
  %300 = vmatprep.subr.mxu0 0.0
  %301 = vmatpush1.msra.mxu0 0.0
  %302 = vmatprep.subr.mxu0 0.0
  %303 = vmatpush1.msra.mxu0 0.0
  %304 = vmatprep.subr.mxu0 0.0
  %305 = vmatpush1.msra.mxu0 0.0
  %306 = vmatprep.subr.mxu0 0.0
  %307 = vmatpush1.msra.mxu0 0.0
  %308 = vmatprep.subr.mxu0 0.0
  %309 = vmatpush1.msra.mxu0 0.0
  %310 = vmatprep.subr.mxu0 0.0
  %311 = vmatpush1.msra.mxu0 0.0
  %312 = vmatprep.subr.mxu0 0.0
  %313 = vmatpush1.msra.mxu0 0.0
  %314 = vmatprep.subr.mxu0 0.0
  %315 = vmatpush1.msra.mxu0 0.0
  %316 = vmatprep.subr.mxu0 0.0
  %317 = vmatpush1.msra.mxu0 0.0
  %318 = vmatprep.subr.mxu0 0.0
  %319 = vmatpush1.msra.mxu0 0.0
  %320 = vmatprep.subr.mxu0 0.0
  %321 = vmatpush1.msra.mxu0 0.0
  %322 = vmatprep.subr.mxu0 0.0
  %323 = vmatpush1.msra.mxu0 0.0
  %324 = vmatprep.subr.mxu0 0.0
  %325 = vmatpush1.msra.mxu0 0.0
  %326 = vmatprep.subr.mxu0 0.0
  %327 = vmatpush1.msra.mxu0 0.0
  %328 = vmatprep.subr.mxu0 0.0
  %329 = vmatpush1.msra.mxu0 0.0
  %330 = vmatprep.subr.mxu0 0.0
  %331 = vmatpush1.msra.mxu0 0.0
  %332 = vmatprep.subr.mxu0 0.0
  %333 = vmatpush1.msra.mxu0 0.0
  %334 = vmatprep.subr.mxu0 0.0
  %335 = vmatpush1.msra.mxu0 0.0
  %336 = vmatprep.subr.mxu0 0.0
  %337 = vmatpush1.msra.mxu0 0.0
  %338 = vmatprep.subr.mxu0 0.0
  %339 = vmatpush1.msra.mxu0 0.0
  %340 = vmatprep.subr.mxu0 0.0
  %341 = vmatpush1.msra.mxu0 0.0
  %342 = vmatprep.subr.mxu0 0.0
  %343 = vmatpush1.msra.mxu0 0.0
  %344 = vmatprep.mubr.f32.mxu0 0.0
  %345 = vmatmul.mubr.f32.gmra.mrb[0].mxu0 %v276
  %v346 = vpop.f32.mrb[0].mxu0
  %v347 = vadd.f32 %v268, %v346
  %v348 = vpop.f32.mrb[0].mxu0
  %349 = vmatprep.mubr.f32.mxu0 0.0
  %350 = vmatmul.mubr.f32.gmra.mrb[0].mxu0 %v278
  %v351 = vpop.f32.mrb[0].mxu0
  %v352 = vadd.f32 %v273, %v351
  %v353 = vpop.f32.mrb[0].mxu0
  %354 = vdwg.mxu0
  %v357 = vrot.slane %v180, 1
  %v358 = vrot.slane %v182, 1
  %v359 = vsel %vm148, %v357, %v358
  %v360 = vsel %vm196, %v359, 0
  %v362 = vsel %vm196, %v358, 0
  %364 = vmatprep.subr.mxu0 0.0
  %365 = vmatpush1.msra.mxu0 %v187
  %366 = vmatprep.subr.mxu0 0.0
  %367 = vmatpush1.msra.mxu0 %v188
  %368 = vmatprep.subr.mxu0 0.0
  %369 = vmatpush1.msra.mxu0 %v189
  %370 = vmatprep.subr.mxu0 0.0
  %371 = vmatpush1.msra.mxu0 %v190
  %372 = vmatprep.subr.mxu0 0.0
  %373 = vmatpush1.msra.mxu0 0.0
  %374 = vmatprep.subr.mxu0 0.0
  %375 = vmatpush1.msra.mxu0 0.0
  %376 = vmatprep.subr.mxu0 0.0
  %377 = vmatpush1.msra.mxu0 0.0
  %378 = vmatprep.subr.mxu0 0.0
  %379 = vmatpush1.msra.mxu0 0.0
  %380 = vmatprep.subr.mxu0 0.0
  %381 = vmatpush1.msra.mxu0 0.0
  %382 = vmatprep.subr.mxu0 0.0
  %383 = vmatpush1.msra.mxu0 0.0
  %384 = vmatprep.subr.mxu0 0.0
  %385 = vmatpush1.msra.mxu0 0.0
  %386 = vmatprep.subr.mxu0 0.0
  %387 = vmatpush1.msra.mxu0 0.0
  %388 = vmatprep.subr.mxu0 0.0
  %389 = vmatpush1.msra.mxu0 0.0
  %390 = vmatprep.subr.mxu0 0.0
  %391 = vmatpush1.msra.mxu0 0.0
  %392 = vmatprep.subr.mxu0 0.0
  %393 = vmatpush1.msra.mxu0 0.0
  %394 = vmatprep.subr.mxu0 0.0
  %395 = vmatpush1.msra.mxu0 0.0
  %396 = vmatprep.subr.mxu0 0.0
  %397 = vmatpush1.msra.mxu0 0.0
  %398 = vmatprep.subr.mxu0 0.0
  %399 = vmatpush1.msra.mxu0 0.0
  %400 = vmatprep.subr.mxu0 0.0
  %401 = vmatpush1.msra.mxu0 0.0
  %402 = vmatprep.subr.mxu0 0.0
  %403 = vmatpush1.msra.mxu0 0.0
  %404 = vmatprep.subr.mxu0 0.0
  %405 = vmatpush1.msra.mxu0 0.0
  %406 = vmatprep.subr.mxu0 0.0
  %407 = vmatpush1.msra.mxu0 0.0
  %408 = vmatprep.subr.mxu0 0.0
  %409 = vmatpush1.msra.mxu0 0.0
  %410 = vmatprep.subr.mxu0 0.0
  %411 = vmatpush1.msra.mxu0 0.0
  %412 = vmatprep.subr.mxu0 0.0
  %413 = vmatpush1.msra.mxu0 0.0
  %414 = vmatprep.subr.mxu0 0.0
  %415 = vmatpush1.msra.mxu0 0.0
  %416 = vmatprep.subr.mxu0 0.0
  %417 = vmatpush1.msra.mxu0 0.0
  %418 = vmatprep.subr.mxu0 0.0
  %419 = vmatpush1.msra.mxu0 0.0
  %420 = vmatprep.subr.mxu0 0.0
  %421 = vmatpush1.msra.mxu0 0.0
  %422 = vmatprep.subr.mxu0 0.0
  %423 = vmatpush1.msra.mxu0 0.0
  %424 = vmatprep.subr.mxu0 0.0
  %425 = vmatpush1.msra.mxu0 0.0
  %426 = vmatprep.subr.mxu0 0.0
  %427 = vmatpush1.msra.mxu0 0.0
  %428 = vmatprep.mubr.f32.mxu0 0.0
  %429 = vmatmul.mubr.f32.gmra.mrb[0].mxu0 %v360
  %v430 = vpop.f32.mrb[0].mxu0
  %v431 = vadd.f32 0.0, %v430
  %v432 = vpop.f32.mrb[0].mxu0
  %433 = vmatprep.mubr.f32.mxu0 0.0
  %434 = vmatmul.mubr.f32.gmra.mrb[0].mxu0 %v362
  %v435 = vpop.f32.mrb[0].mxu0
  %v436 = vadd.f32 0.0, %v435
  %v437 = vpop.f32.mrb[0].mxu0
  %438 = vdwg.mxu0
  %v439 = vsel %vm196, %v180, 0
  %v441 = vsel %vm196, %v182, 0
  %443 = vmatprep.subr.mxu0 0.0
  %444 = vmatpush1.msra.mxu0 %v183
  %445 = vmatprep.subr.mxu0 0.0
  %446 = vmatpush1.msra.mxu0 %v184
  %447 = vmatprep.subr.mxu0 0.0
  %448 = vmatpush1.msra.mxu0 %v185
  %449 = vmatprep.subr.mxu0 0.0
  %450 = vmatpush1.msra.mxu0 %v186
  %451 = vmatprep.subr.mxu0 0.0
  %452 = vmatpush1.msra.mxu0 0.0
  %453 = vmatprep.subr.mxu0 0.0
  %454 = vmatpush1.msra.mxu0 0.0
  %455 = vmatprep.subr.mxu0 0.0
  %456 = vmatpush1.msra.mxu0 0.0
  %457 = vmatprep.subr.mxu0 0.0
  %458 = vmatpush1.msra.mxu0 0.0
  %459 = vmatprep.subr.mxu0 0.0
  %460 = vmatpush1.msra.mxu0 0.0
  %461 = vmatprep.subr.mxu0 0.0
  %462 = vmatpush1.msra.mxu0 0.0
  %463 = vmatprep.subr.mxu0 0.0
  %464 = vmatpush1.msra.mxu0 0.0
  %465 = vmatprep.subr.mxu0 0.0
  %466 = vmatpush1.msra.mxu0 0.0
  %467 = vmatprep.subr.mxu0 0.0
  %468 = vmatpush1.msra.mxu0 0.0
  %469 = vmatprep.subr.mxu0 0.0
  %470 = vmatpush1.msra.mxu0 0.0
  %471 = vmatprep.subr.mxu0 0.0
  %472 = vmatpush1.msra.mxu0 0.0
  %473 = vmatprep.subr.mxu0 0.0
  %474 = vmatpush1.msra.mxu0 0.0
  %475 = vmatprep.subr.mxu0 0.0
  %476 = vmatpush1.msra.mxu0 0.0
  %477 = vmatprep.subr.mxu0 0.0
  %478 = vmatpush1.msra.mxu0 0.0
  %479 = vmatprep.subr.mxu0 0.0
  %480 = vmatpush1.msra.mxu0 0.0
  %481 = vmatprep.subr.mxu0 0.0
  %482 = vmatpush1.msra.mxu0 0.0
  %483 = vmatprep.subr.mxu0 0.0
  %484 = vmatpush1.msra.mxu0 0.0
  %485 = vmatprep.subr.mxu0 0.0
  %486 = vmatpush1.msra.mxu0 0.0
  %487 = vmatprep.subr.mxu0 0.0
  %488 = vmatpush1.msra.mxu0 0.0
  %489 = vmatprep.subr.mxu0 0.0
  %490 = vmatpush1.msra.mxu0 0.0
  %491 = vmatprep.subr.mxu0 0.0
  %492 = vmatpush1.msra.mxu0 0.0
  %493 = vmatprep.subr.mxu0 0.0
  %494 = vmatpush1.msra.mxu0 0.0
  %495 = vmatprep.subr.mxu0 0.0
  %496 = vmatpush1.msra.mxu0 0.0
  %497 = vmatprep.subr.mxu0 0.0
  %498 = vmatpush1.msra.mxu0 0.0
  %499 = vmatprep.subr.mxu0 0.0
  %500 = vmatpush1.msra.mxu0 0.0
  %501 = vmatprep.subr.mxu0 0.0
  %502 = vmatpush1.msra.mxu0 0.0
  %503 = vmatprep.subr.mxu0 0.0
  %504 = vmatpush1.msra.mxu0 0.0
  %505 = vmatprep.subr.mxu0 0.0
  %506 = vmatpush1.msra.mxu0 0.0
  %507 = vmatprep.mubr.f32.mxu0 0.0
  %508 = vmatmul.mubr.f32.gmra.mrb[0].mxu0 %v439
  %v509 = vpop.f32.mrb[0].mxu0
  %v510 = vadd.f32 %v431, %v509
  %v511 = vpop.f32.mrb[0].mxu0
  %512 = vmatprep.mubr.f32.mxu0 0.0
  %513 = vmatmul.mubr.f32.gmra.mrb[0].mxu0 %v441
  %v514 = vpop.f32.mrb[0].mxu0
  %v515 = vadd.f32 %v436, %v514
  %v516 = vpop.f32.mrb[0].mxu0
  %517 = vdwg.mxu0
  %v518 = vld [vmem:[%s2 + $0x40] sm:$0xff]
  %v519 = vld [vmem:[%s2 + $0x48] sm:$0xff]
  %v520 = vld [vmem:[%s2 + $0x50] sm:$0xff]
  %v521 = vld [vmem:[%s2 + $0x58] sm:$0xff]
  %v522 = vrot.slane %v149, 2
  %v523 = vrot.slane %v152, 2
  %v524 = vsel %vm146, %v522, %v523
  %v525 = vsel %vm196, %v524, 0
  %v527 = vsel %vm196, %v523, 0
  %529 = vmatprep.subr.mxu0 0.0
  %530 = vmatpush1.msra.mxu0 %v518
  %531 = vmatprep.subr.mxu0 0.0
  %532 = vmatpush1.msra.mxu0 %v519
  %533 = vmatprep.subr.mxu0 0.0
  %534 = vmatpush1.msra.mxu0 %v520
  %535 = vmatprep.subr.mxu0 0.0
  %536 = vmatpush1.msra.mxu0 %v521
  %537 = vmatprep.subr.mxu0 0.0
  %538 = vmatpush1.msra.mxu0 0.0
  %539 = vmatprep.subr.mxu0 0.0
  %540 = vmatpush1.msra.mxu0 0.0
  %541 = vmatprep.subr.mxu0 0.0
  %542 = vmatpush1.msra.mxu0 0.0
  %543 = vmatprep.subr.mxu0 0.0
  %544 = vmatpush1.msra.mxu0 0.0
  %545 = vmatprep.subr.mxu0 0.0
  %546 = vmatpush1.msra.mxu0 0.0
  %547 = vmatprep.subr.mxu0 0.0
  %548 = vmatpush1.msra.mxu0 0.0
  %549 = vmatprep.subr.mxu0 0.0
  %550 = vmatpush1.msra.mxu0 0.0
  %551 = vmatprep.subr.mxu0 0.0
  %552 = vmatpush1.msra.mxu0 0.0
  %553 = vmatprep.subr.mxu0 0.0
  %554 = vmatpush1.msra.mxu0 0.0
  %555 = vmatprep.subr.mxu0 0.0
  %556 = vmatpush1.msra.mxu0 0.0
  %557 = vmatprep.subr.mxu0 0.0
  %558 = vmatpush1.msra.mxu0 0.0
  %559 = vmatprep.subr.mxu0 0.0
  %560 = vmatpush1.msra.mxu0 0.0
  %561 = vmatprep.subr.mxu0 0.0
  %562 = vmatpush1.msra.mxu0 0.0
  %563 = vmatprep.subr.mxu0 0.0
  %564 = vmatpush1.msra.mxu0 0.0
  %565 = vmatprep.subr.mxu0 0.0
  %566 = vmatpush1.msra.mxu0 0.0
  %567 = vmatprep.subr.mxu0 0.0
  %568 = vmatpush1.msra.mxu0 0.0
  %569 = vmatprep.subr.mxu0 0.0
  %570 = vmatpush1.msra.mxu0 0.0
  %571 = vmatprep.subr.mxu0 0.0
  %572 = vmatpush1.msra.mxu0 0.0
  %573 = vmatprep.subr.mxu0 0.0
  %574 = vmatpush1.msra.mxu0 0.0
  %575 = vmatprep.subr.mxu0 0.0
  %576 = vmatpush1.msra.mxu0 0.0
  %577 = vmatprep.subr.mxu0 0.0
  %578 = vmatpush1.msra.mxu0 0.0
  %579 = vmatprep.subr.mxu0 0.0
  %580 = vmatpush1.msra.mxu0 0.0
  %581 = vmatprep.subr.mxu0 0.0
  %582 = vmatpush1.msra.mxu0 0.0
  %583 = vmatprep.subr.mxu0 0.0
  %584 = vmatpush1.msra.mxu0 0.0
  %585 = vmatprep.subr.mxu0 0.0
  %586 = vmatpush1.msra.mxu0 0.0
  %587 = vmatprep.subr.mxu0 0.0
  %588 = vmatpush1.msra.mxu0 0.0
  %589 = vmatprep.subr.mxu0 0.0
  %590 = vmatpush1.msra.mxu0 0.0
  %591 = vmatprep.subr.mxu0 0.0
  %592 = vmatpush1.msra.mxu0 0.0
  %593 = vmatprep.mubr.f32.mxu0 0.0
  %594 = vmatmul.mubr.f32.gmra.mrb[0].mxu0 %v525
  %v595 = vpop.f32.mrb[0].mxu0
  %v596 = vadd.f32 0.0, %v595
  %v597 = vpop.f32.mrb[0].mxu0
  %598 = vmatprep.mubr.f32.mxu0 0.0
  %599 = vmatmul.mubr.f32.gmra.mrb[0].mxu0 %v527
  %v600 = vpop.f32.mrb[0].mxu0
  %v601 = vadd.f32 0.0, %v600
  %v602 = vpop.f32.mrb[0].mxu0
  %603 = vdwg.mxu0
  %v604 = vadd.f32 %v347, %v596
  %v605 = vadd.f32 %v352, %v601
  %v606 = vrot.slane %v180, 2
  %v607 = vrot.slane %v182, 2
  %v608 = vsel %vm146, %v606, %v607
  %v609 = vsel %vm196, %v608, 0
  %v611 = vsel %vm196, %v607, 0
  %613 = vmatprep.subr.mxu0 0.0
  %614 = vmatpush1.msra.mxu0 %v518
  %615 = vmatprep.subr.mxu0 0.0
  %616 = vmatpush1.msra.mxu0 %v519
  %617 = vmatprep.subr.mxu0 0.0
  %618 = vmatpush1.msra.mxu0 %v520
  %619 = vmatprep.subr.mxu0 0.0
  %620 = vmatpush1.msra.mxu0 %v521
  %621 = vmatprep.subr.mxu0 0.0
  %622 = vmatpush1.msra.mxu0 0.0
  %623 = vmatprep.subr.mxu0 0.0
  %624 = vmatpush1.msra.mxu0 0.0
  %625 = vmatprep.subr.mxu0 0.0
  %626 = vmatpush1.msra.mxu0 0.0
  %627 = vmatprep.subr.mxu0 0.0
  %628 = vmatpush1.msra.mxu0 0.0
  %629 = vmatprep.subr.mxu0 0.0
  %630 = vmatpush1.msra.mxu0 0.0
  %631 = vmatprep.subr.mxu0 0.0
  %632 = vmatpush1.msra.mxu0 0.0
  %633 = vmatprep.subr.mxu0 0.0
  %634 = vmatpush1.msra.mxu0 0.0
  %635 = vmatprep.subr.mxu0 0.0
  %636 = vmatpush1.msra.mxu0 0.0
  %637 = vmatprep.subr.mxu0 0.0
  %638 = vmatpush1.msra.mxu0 0.0
  %639 = vmatprep.subr.mxu0 0.0
  %640 = vmatpush1.msra.mxu0 0.0
  %641 = vmatprep.subr.mxu0 0.0
  %642 = vmatpush1.msra.mxu0 0.0
  %643 = vmatprep.subr.mxu0 0.0
  %644 = vmatpush1.msra.mxu0 0.0
  %645 = vmatprep.subr.mxu0 0.0
  %646 = vmatpush1.msra.mxu0 0.0
  %647 = vmatprep.subr.mxu0 0.0
  %648 = vmatpush1.msra.mxu0 0.0
  %649 = vmatprep.subr.mxu0 0.0
  %650 = vmatpush1.msra.mxu0 0.0
  %651 = vmatprep.subr.mxu0 0.0
  %652 = vmatpush1.msra.mxu0 0.0
  %653 = vmatprep.subr.mxu0 0.0
  %654 = vmatpush1.msra.mxu0 0.0
  %655 = vmatprep.subr.mxu0 0.0
  %656 = vmatpush1.msra.mxu0 0.0
  %657 = vmatprep.subr.mxu0 0.0
  %658 = vmatpush1.msra.mxu0 0.0
  %659 = vmatprep.subr.mxu0 0.0
  %660 = vmatpush1.msra.mxu0 0.0
  %661 = vmatprep.subr.mxu0 0.0
  %662 = vmatpush1.msra.mxu0 0.0
  %663 = vmatprep.subr.mxu0 0.0
  %664 = vmatpush1.msra.mxu0 0.0
  %665 = vmatprep.subr.mxu0 0.0
  %666 = vmatpush1.msra.mxu0 0.0
  %667 = vmatprep.subr.mxu0 0.0
  %668 = vmatpush1.msra.mxu0 0.0
  %669 = vmatprep.subr.mxu0 0.0
  %670 = vmatpush1.msra.mxu0 0.0
  %671 = vmatprep.subr.mxu0 0.0
  %672 = vmatpush1.msra.mxu0 0.0
  %673 = vmatprep.subr.mxu0 0.0
  %674 = vmatpush1.msra.mxu0 0.0
  %675 = vmatprep.subr.mxu0 0.0
  %676 = vmatpush1.msra.mxu0 0.0
  %677 = vmatprep.mubr.f32.mxu0 0.0
  %678 = vmatmul.mubr.f32.gmra.mrb[0].mxu0 %v609
  %v679 = vpop.f32.mrb[0].mxu0
  %v680 = vadd.f32 0.0, %v679
  %v681 = vpop.f32.mrb[0].mxu0
  %682 = vmatprep.mubr.f32.mxu0 0.0
  %683 = vmatmul.mubr.f32.gmra.mrb[0].mxu0 %v611
  %v684 = vpop.f32.mrb[0].mxu0
  %v685 = vadd.f32 0.0, %v684
  %v686 = vpop.f32.mrb[0].mxu0
  %687 = vdwg.mxu0
  %v688 = vadd.f32 %v510, %v680
  %v689 = vadd.f32 %v515, %v685
  %v690 = vld [vmem:[%s2 + $0x270] sm:$0x1]
  %v691 = vlaneseq
  %v692 = vshrl.u32 %v691, 7
  %v693 = vsub.s32 0, %v692
  %v694 = vrot.slane %v690, %v693
  %v695 = vadd.f32 %v604, %v694
  %v696 = vadd.f32 %v605, %v694
  %v697 = vadd.f32 %v688, %v694
  %v698 = vadd.f32 %v689, %v694
  %v699 = vmax.f32 %v695, 0.0
  %v700 = vmax.f32 %v696, 0.0
  %v701 = vmax.f32 %v697, 0.0
  %v702 = vmax.f32 %v698, 0.0
  %v705 = vrot.slane %v699, 6
  %v706 = vrot.slane %v700, 6
  %v707 = vsel %vm138, %v705, %v706
  %v710 = vsel %vm138, 0.0, %v705
  %v711 = vsel %vm142, %v707, 0.0
  %v714 = vrot.slane %v701, 6
  %v715 = vrot.slane %v702, 6
  %v716 = vsel %vm138, %v714, %v715
  %v719 = vsel %vm138, 0.0, %v714
  %v720 = vsel %vm142, %v716, 0.0
  %v721 = vld [vmem:[%s2 + $0x60] sm:$0xff]
  %v722 = vld [vmem:[%s2 + $0x68] sm:$0xff]
  %v723 = vld [vmem:[%s2 + $0x70] sm:$0xff]
  %v724 = vld [vmem:[%s2 + $0x78] sm:$0xff]
  %v725 = vld [vmem:[%s2 + $0x80] sm:$0xff]
  %v726 = vld [vmem:[%s2 + $0x88] sm:$0xff]
  %v727 = vld [vmem:[%s2 + $0x90] sm:$0xff]
  %v728 = vld [vmem:[%s2 + $0x98] sm:$0xff]
  %v729 = vld [vmem:[%s2 + $0xa0] sm:$0xff]
  %v730 = vld [vmem:[%s2 + $0xa8] sm:$0xff]
  %v731 = vld [vmem:[%s2 + $0xb0] sm:$0xff]
  %v732 = vld [vmem:[%s2 + $0xb8] sm:$0xff]
  %v733 = vld [vmem:[%s2 + $0xc0] sm:$0xff]
  %v734 = vld [vmem:[%s2 + $0xc8] sm:$0xff]
  %v735 = vld [vmem:[%s2 + $0xd0] sm:$0xff]
  %v736 = vld [vmem:[%s2 + $0xd8] sm:$0xff]
  %v737 = vld [vmem:[%s2 + $0xe0] sm:$0xff]
  %v738 = vld [vmem:[%s2 + $0xe8] sm:$0xff]
  %v739 = vld [vmem:[%s2 + $0xf0] sm:$0xff]
  %v740 = vld [vmem:[%s2 + $0xf8] sm:$0xff]
  %v743 = vrot.slane %v710, 1
  %v744 = vrot.slane %v711, 1
  %v745 = vsel %vm148, %v743, %v744
  %vm746 = vcmask 654336
  %v747 = vsel %vm746, %v745, 0
  %v749 = vsel %vm746, %v744, 0
  %751 = vmatprep.subr.mxu0 0.0
  %752 = vmatpush1.msra.mxu0 %v731
  %753 = vmatprep.subr.mxu0 0.0
  %754 = vmatpush1.msra.mxu0 %v732
  %755 = vmatprep.subr.mxu0 0.0
  %756 = vmatpush1.msra.mxu0 %v733
  %757 = vmatprep.subr.mxu0 0.0
  %758 = vmatpush1.msra.mxu0 %v734
  %759 = vmatprep.subr.mxu0 0.0
  %760 = vmatpush1.msra.mxu0 %v735
  %761 = vmatprep.subr.mxu0 0.0
  %762 = vmatpush1.msra.mxu0 %v736
  %763 = vmatprep.subr.mxu0 0.0
  %764 = vmatpush1.msra.mxu0 %v737
  %765 = vmatprep.subr.mxu0 0.0
  %766 = vmatpush1.msra.mxu0 %v738
  %767 = vmatprep.subr.mxu0 0.0
  %768 = vmatpush1.msra.mxu0 %v739
  %769 = vmatprep.subr.mxu0 0.0
  %770 = vmatpush1.msra.mxu0 %v740
  %771 = vmatprep.subr.mxu0 0.0
  %772 = vmatpush1.msra.mxu0 0.0
  %773 = vmatprep.subr.mxu0 0.0
  %774 = vmatpush1.msra.mxu0 0.0
  %775 = vmatprep.subr.mxu0 0.0
  %776 = vmatpush1.msra.mxu0 0.0
  %777 = vmatprep.subr.mxu0 0.0
  %778 = vmatpush1.msra.mxu0 0.0
  %779 = vmatprep.subr.mxu0 0.0
  %780 = vmatpush1.msra.mxu0 0.0
  %781 = vmatprep.subr.mxu0 0.0
  %782 = vmatpush1.msra.mxu0 0.0
  %783 = vmatprep.subr.mxu0 0.0
  %784 = vmatpush1.msra.mxu0 0.0
  %785 = vmatprep.subr.mxu0 0.0
  %786 = vmatpush1.msra.mxu0 0.0
  %787 = vmatprep.subr.mxu0 0.0
  %788 = vmatpush1.msra.mxu0 0.0
  %789 = vmatprep.subr.mxu0 0.0
  %790 = vmatpush1.msra.mxu0 0.0
  %791 = vmatprep.subr.mxu0 0.0
  %792 = vmatpush1.msra.mxu0 0.0
  %793 = vmatprep.subr.mxu0 0.0
  %794 = vmatpush1.msra.mxu0 0.0
  %795 = vmatprep.subr.mxu0 0.0
  %796 = vmatpush1.msra.mxu0 0.0
  %797 = vmatprep.subr.mxu0 0.0
  %798 = vmatpush1.msra.mxu0 0.0
  %799 = vmatprep.subr.mxu0 0.0
  %800 = vmatpush1.msra.mxu0 0.0
  %801 = vmatprep.subr.mxu0 0.0
  %802 = vmatpush1.msra.mxu0 0.0
  %803 = vmatprep.subr.mxu0 0.0
  %804 = vmatpush1.msra.mxu0 0.0
  %805 = vmatprep.subr.mxu0 0.0
  %806 = vmatpush1.msra.mxu0 0.0
  %807 = vmatprep.subr.mxu0 0.0
  %808 = vmatpush1.msra.mxu0 0.0
  %809 = vmatprep.subr.mxu0 0.0
  %810 = vmatpush1.msra.mxu0 0.0
  %811 = vmatprep.subr.mxu0 0.0
  %812 = vmatpush1.msra.mxu0 0.0
  %813 = vmatprep.subr.mxu0 0.0
  %814 = vmatpush1.msra.mxu0 0.0
  %815 = vmatprep.mubr.f32.mxu0 0.0
  %816 = vmatmul.mubr.f32.gmra.mrb[0].mxu0 %v747
  %v817 = vpop.f32.mrb[0].mxu0
  %v818 = vadd.f32 0.0, %v817
  %v819 = vpop.f32.mrb[0].mxu0
  %820 = vmatprep.mubr.f32.mxu0 0.0
  %821 = vmatmul.mubr.f32.gmra.mrb[0].mxu0 %v749
  %v822 = vpop.f32.mrb[0].mxu0
  %v823 = vadd.f32 0.0, %v822
  %v824 = vpop.f32.mrb[0].mxu0
  %825 = vdwg.mxu0
  %v826 = vsel %vm746, %v710, 0
  %v828 = vsel %vm746, %v711, 0
  %830 = vmatprep.subr.mxu0 0.0
  %831 = vmatpush1.msra.mxu0 %v721
  %832 = vmatprep.subr.mxu0 0.0
  %833 = vmatpush1.msra.mxu0 %v722
  %834 = vmatprep.subr.mxu0 0.0
  %835 = vmatpush1.msra.mxu0 %v723
  %836 = vmatprep.subr.mxu0 0.0
  %837 = vmatpush1.msra.mxu0 %v724
  %838 = vmatprep.subr.mxu0 0.0
  %839 = vmatpush1.msra.mxu0 %v725
  %840 = vmatprep.subr.mxu0 0.0
  %841 = vmatpush1.msra.mxu0 %v726
  %842 = vmatprep.subr.mxu0 0.0
  %843 = vmatpush1.msra.mxu0 %v727
  %844 = vmatprep.subr.mxu0 0.0
  %845 = vmatpush1.msra.mxu0 %v728
  %846 = vmatprep.subr.mxu0 0.0
  %847 = vmatpush1.msra.mxu0 %v729
  %848 = vmatprep.subr.mxu0 0.0
  %849 = vmatpush1.msra.mxu0 %v730
  %850 = vmatprep.subr.mxu0 0.0
  %851 = vmatpush1.msra.mxu0 0.0
  %852 = vmatprep.subr.mxu0 0.0
  %853 = vmatpush1.msra.mxu0 0.0
  %854 = vmatprep.subr.mxu0 0.0
  %855 = vmatpush1.msra.mxu0 0.0
  %856 = vmatprep.subr.mxu0 0.0
  %857 = vmatpush1.msra.mxu0 0.0
  %858 = vmatprep.subr.mxu0 0.0
  %859 = vmatpush1.msra.mxu0 0.0
  %860 = vmatprep.subr.mxu0 0.0
  %861 = vmatpush1.msra.mxu0 0.0
  %862 = vmatprep.subr.mxu0 0.0
  %863 = vmatpush1.msra.mxu0 0.0
  %864 = vmatprep.subr.mxu0 0.0
  %865 = vmatpush1.msra.mxu0 0.0
  %866 = vmatprep.subr.mxu0 0.0
  %867 = vmatpush1.msra.mxu0 0.0
  %868 = vmatprep.subr.mxu0 0.0
  %869 = vmatpush1.msra.mxu0 0.0
  %870 = vmatprep.subr.mxu0 0.0
  %871 = vmatpush1.msra.mxu0 0.0
  %872 = vmatprep.subr.mxu0 0.0
  %873 = vmatpush1.msra.mxu0 0.0
  %874 = vmatprep.subr.mxu0 0.0
  %875 = vmatpush1.msra.mxu0 0.0
  %876 = vmatprep.subr.mxu0 0.0
  %877 = vmatpush1.msra.mxu0 0.0
  %878 = vmatprep.subr.mxu0 0.0
  %879 = vmatpush1.msra.mxu0 0.0
  %880 = vmatprep.subr.mxu0 0.0
  %881 = vmatpush1.msra.mxu0 0.0
  %882 = vmatprep.subr.mxu0 0.0
  %883 = vmatpush1.msra.mxu0 0.0
  %884 = vmatprep.subr.mxu0 0.0
  %885 = vmatpush1.msra.mxu0 0.0
  %886 = vmatprep.subr.mxu0 0.0
  %887 = vmatpush1.msra.mxu0 0.0
  %888 = vmatprep.subr.mxu0 0.0
  %889 = vmatpush1.msra.mxu0 0.0
  %890 = vmatprep.subr.mxu0 0.0
  %891 = vmatpush1.msra.mxu0 0.0
  %892 = vmatprep.subr.mxu0 0.0
  %893 = vmatpush1.msra.mxu0 0.0
  %894 = vmatprep.mubr.f32.mxu0 0.0
  %895 = vmatmul.mubr.f32.gmra.mrb[0].mxu0 %v826
  %v896 = vpop.f32.mrb[0].mxu0
  %v897 = vadd.f32 %v818, %v896
  %v898 = vpop.f32.mrb[0].mxu0
  %899 = vmatprep.mubr.f32.mxu0 0.0
  %900 = vmatmul.mubr.f32.gmra.mrb[0].mxu0 %v828
  %v901 = vpop.f32.mrb[0].mxu0
  %v902 = vadd.f32 %v823, %v901
  %v903 = vpop.f32.mrb[0].mxu0
  %904 = vdwg.mxu0
  %v907 = vrot.slane %v719, 1
  %v908 = vrot.slane %v720, 1
  %v909 = vsel %vm148, %v907, %v908
  %v910 = vsel %vm746, %v909, 0
  %v912 = vsel %vm746, %v908, 0
  %914 = vmatprep.subr.mxu0 0.0
  %915 = vmatpush1.msra.mxu0 %v731
  %916 = vmatprep.subr.mxu0 0.0
  %917 = vmatpush1.msra.mxu0 %v732
  %918 = vmatprep.subr.mxu0 0.0
  %919 = vmatpush1.msra.mxu0 %v733
  %920 = vmatprep.subr.mxu0 0.0
  %921 = vmatpush1.msra.mxu0 %v734
  %922 = vmatprep.subr.mxu0 0.0
  %923 = vmatpush1.msra.mxu0 %v735
  %924 = vmatprep.subr.mxu0 0.0
  %925 = vmatpush1.msra.mxu0 %v736
  %926 = vmatprep.subr.mxu0 0.0
  %927 = vmatpush1.msra.mxu0 %v737
  %928 = vmatprep.subr.mxu0 0.0
  %929 = vmatpush1.msra.mxu0 %v738
  %930 = vmatprep.subr.mxu0 0.0
  %931 = vmatpush1.msra.mxu0 %v739
  %932 = vmatprep.subr.mxu0 0.0
  %933 = vmatpush1.msra.mxu0 %v740
  %934 = vmatprep.subr.mxu0 0.0
  %935 = vmatpush1.msra.mxu0 0.0
  %936 = vmatprep.subr.mxu0 0.0
  %937 = vmatpush1.msra.mxu0 0.0
  %938 = vmatprep.subr.mxu0 0.0
  %939 = vmatpush1.msra.mxu0 0.0
  %940 = vmatprep.subr.mxu0 0.0
  %941 = vmatpush1.msra.mxu0 0.0
  %942 = vmatprep.subr.mxu0 0.0
  %943 = vmatpush1.msra.mxu0 0.0
  %944 = vmatprep.subr.mxu0 0.0
  %945 = vmatpush1.msra.mxu0 0.0
  %946 = vmatprep.subr.mxu0 0.0
  %947 = vmatpush1.msra.mxu0 0.0
  %948 = vmatprep.subr.mxu0 0.0
  %949 = vmatpush1.msra.mxu0 0.0
  %950 = vmatprep.subr.mxu0 0.0
  %951 = vmatpush1.msra.mxu0 0.0
  %952 = vmatprep.subr.mxu0 0.0
  %953 = vmatpush1.msra.mxu0 0.0
  %954 = vmatprep.subr.mxu0 0.0
  %955 = vmatpush1.msra.mxu0 0.0
  %956 = vmatprep.subr.mxu0 0.0
  %957 = vmatpush1.msra.mxu0 0.0
  %958 = vmatprep.subr.mxu0 0.0
  %959 = vmatpush1.msra.mxu0 0.0
  %960 = vmatprep.subr.mxu0 0.0
  %961 = vmatpush1.msra.mxu0 0.0
  %962 = vmatprep.subr.mxu0 0.0
  %963 = vmatpush1.msra.mxu0 0.0
  %964 = vmatprep.subr.mxu0 0.0
  %965 = vmatpush1.msra.mxu0 0.0
  %966 = vmatprep.subr.mxu0 0.0
  %967 = vmatpush1.msra.mxu0 0.0
  %968 = vmatprep.subr.mxu0 0.0
  %969 = vmatpush1.msra.mxu0 0.0
  %970 = vmatprep.subr.mxu0 0.0
  %971 = vmatpush1.msra.mxu0 0.0
  %972 = vmatprep.subr.mxu0 0.0
  %973 = vmatpush1.msra.mxu0 0.0
  %974 = vmatprep.subr.mxu0 0.0
  %975 = vmatpush1.msra.mxu0 0.0
  %976 = vmatprep.subr.mxu0 0.0
  %977 = vmatpush1.msra.mxu0 0.0
  %978 = vmatprep.mubr.f32.mxu0 0.0
  %979 = vmatmul.mubr.f32.gmra.mrb[0].mxu0 %v910
  %v980 = vpop.f32.mrb[0].mxu0
  %v981 = vadd.f32 0.0, %v980
  %v982 = vpop.f32.mrb[0].mxu0
  %983 = vmatprep.mubr.f32.mxu0 0.0
  %984 = vmatmul.mubr.f32.gmra.mrb[0].mxu0 %v912
  %v985 = vpop.f32.mrb[0].mxu0
  %v986 = vadd.f32 0.0, %v985
  %v987 = vpop.f32.mrb[0].mxu0
  %988 = vdwg.mxu0
  %v989 = vsel %vm746, %v719, 0
  %v991 = vsel %vm746, %v720, 0
  %993 = vmatprep.subr.mxu0 0.0
  %994 = vmatpush1.msra.mxu0 %v721
  %995 = vmatprep.subr.mxu0 0.0
  %996 = vmatpush1.msra.mxu0 %v722
  %997 = vmatprep.subr.mxu0 0.0
  %998 = vmatpush1.msra.mxu0 %v723
  %999 = vmatprep.subr.mxu0 0.0
  %1000 = vmatpush1.msra.mxu0 %v724
  %1001 = vmatprep.subr.mxu0 0.0
  %1002 = vmatpush1.msra.mxu0 %v725
  %1003 = vmatprep.subr.mxu0 0.0
  %1004 = vmatpush1.msra.mxu0 %v726
  %1005 = vmatprep.subr.mxu0 0.0
  %1006 = vmatpush1.msra.mxu0 %v727
  %1007 = vmatprep.subr.mxu0 0.0
  %1008 = vmatpush1.msra.mxu0 %v728
  %1009 = vmatprep.subr.mxu0 0.0
  %1010 = vmatpush1.msra.mxu0 %v729
  %1011 = vmatprep.subr.mxu0 0.0
  %1012 = vmatpush1.msra.mxu0 %v730
  %1013 = vmatprep.subr.mxu0 0.0
  %1014 = vmatpush1.msra.mxu0 0.0
  %1015 = vmatprep.subr.mxu0 0.0
  %1016 = vmatpush1.msra.mxu0 0.0
  %1017 = vmatprep.subr.mxu0 0.0
  %1018 = vmatpush1.msra.mxu0 0.0
  %1019 = vmatprep.subr.mxu0 0.0
  %1020 = vmatpush1.msra.mxu0 0.0
  %1021 = vmatprep.subr.mxu0 0.0
  %1022 = vmatpush1.msra.mxu0 0.0
  %1023 = vmatprep.subr.mxu0 0.0
  %1024 = vmatpush1.msra.mxu0 0.0
  %1025 = vmatprep.subr.mxu0 0.0
  %1026 = vmatpush1.msra.mxu0 0.0
  %1027 = vmatprep.subr.mxu0 0.0
  %1028 = vmatpush1.msra.mxu0 0.0
  %1029 = vmatprep.subr.mxu0 0.0
  %1030 = vmatpush1.msra.mxu0 0.0
  %1031 = vmatprep.subr.mxu0 0.0
  %1032 = vmatpush1.msra.mxu0 0.0
  %1033 = vmatprep.subr.mxu0 0.0
  %1034 = vmatpush1.msra.mxu0 0.0
  %1035 = vmatprep.subr.mxu0 0.0
  %1036 = vmatpush1.msra.mxu0 0.0
  %1037 = vmatprep.subr.mxu0 0.0
  %1038 = vmatpush1.msra.mxu0 0.0
  %1039 = vmatprep.subr.mxu0 0.0
  %1040 = vmatpush1.msra.mxu0 0.0
  %1041 = vmatprep.subr.mxu0 0.0
  %1042 = vmatpush1.msra.mxu0 0.0
  %1043 = vmatprep.subr.mxu0 0.0
  %1044 = vmatpush1.msra.mxu0 0.0
  %1045 = vmatprep.subr.mxu0 0.0
  %1046 = vmatpush1.msra.mxu0 0.0
  %1047 = vmatprep.subr.mxu0 0.0
  %1048 = vmatpush1.msra.mxu0 0.0
  %1049 = vmatprep.subr.mxu0 0.0
  %1050 = vmatpush1.msra.mxu0 0.0
  %1051 = vmatprep.subr.mxu0 0.0
  %1052 = vmatpush1.msra.mxu0 0.0
  %1053 = vmatprep.subr.mxu0 0.0
  %1054 = vmatpush1.msra.mxu0 0.0
  %1055 = vmatprep.subr.mxu0 0.0
  %1056 = vmatpush1.msra.mxu0 0.0
  %1057 = vmatprep.mubr.f32.mxu0 0.0
  %1058 = vmatmul.mubr.f32.gmra.mrb[0].mxu0 %v989
  %v1059 = vpop.f32.mrb[0].mxu0
  %v1060 = vadd.f32 %v981, %v1059
  %v1061 = vpop.f32.mrb[0].mxu0
  %1062 = vmatprep.mubr.f32.mxu0 0.0
  %1063 = vmatmul.mubr.f32.gmra.mrb[0].mxu0 %v991
  %v1064 = vpop.f32.mrb[0].mxu0
  %v1065 = vadd.f32 %v986, %v1064
  %v1066 = vpop.f32.mrb[0].mxu0
  %1067 = vdwg.mxu0
  %v1068 = vld [vmem:[%s2 + $0x100] sm:$0xff]
  %v1069 = vld [vmem:[%s2 + $0x108] sm:$0xff]
  %v1070 = vld [vmem:[%s2 + $0x110] sm:$0xff]
  %v1071 = vld [vmem:[%s2 + $0x118] sm:$0xff]
  %v1072 = vld [vmem:[%s2 + $0x120] sm:$0xff]
  %v1073 = vld [vmem:[%s2 + $0x128] sm:$0xff]
  %v1074 = vld [vmem:[%s2 + $0x130] sm:$0xff]
  %v1075 = vld [vmem:[%s2 + $0x138] sm:$0xff]
  %v1076 = vld [vmem:[%s2 + $0x140] sm:$0xff]
  %v1077 = vld [vmem:[%s2 + $0x148] sm:$0xff]
  %v1078 = vrot.slane %v710, 2
  %v1079 = vrot.slane %v711, 2
  %v1080 = vsel %vm146, %v1078, %v1079
  %v1081 = vsel %vm746, %v1080, 0
  %v1083 = vsel %vm746, %v1079, 0
  %1085 = vmatprep.subr.mxu0 0.0
  %1086 = vmatpush1.msra.mxu0 %v1068
  %1087 = vmatprep.subr.mxu0 0.0
  %1088 = vmatpush1.msra.mxu0 %v1069
  %1089 = vmatprep.subr.mxu0 0.0
  %1090 = vmatpush1.msra.mxu0 %v1070
  %1091 = vmatprep.subr.mxu0 0.0
  %1092 = vmatpush1.msra.mxu0 %v1071
  %1093 = vmatprep.subr.mxu0 0.0
  %1094 = vmatpush1.msra.mxu0 %v1072
  %1095 = vmatprep.subr.mxu0 0.0
  %1096 = vmatpush1.msra.mxu0 %v1073
  %1097 = vmatprep.subr.mxu0 0.0
  %1098 = vmatpush1.msra.mxu0 %v1074
  %1099 = vmatprep.subr.mxu0 0.0
  %1100 = vmatpush1.msra.mxu0 %v1075
  %1101 = vmatprep.subr.mxu0 0.0
  %1102 = vmatpush1.msra.mxu0 %v1076
  %1103 = vmatprep.subr.mxu0 0.0
  %1104 = vmatpush1.msra.mxu0 %v1077
  %1105 = vmatprep.subr.mxu0 0.0
  %1106 = vmatpush1.msra.mxu0 0.0
  %1107 = vmatprep.subr.mxu0 0.0
  %1108 = vmatpush1.msra.mxu0 0.0
  %1109 = vmatprep.subr.mxu0 0.0
  %1110 = vmatpush1.msra.mxu0 0.0
  %1111 = vmatprep.subr.mxu0 0.0
  %1112 = vmatpush1.msra.mxu0 0.0
  %1113 = vmatprep.subr.mxu0 0.0
  %1114 = vmatpush1.msra.mxu0 0.0
  %1115 = vmatprep.subr.mxu0 0.0
  %1116 = vmatpush1.msra.mxu0 0.0
  %1117 = vmatprep.subr.mxu0 0.0
  %1118 = vmatpush1.msra.mxu0 0.0
  %1119 = vmatprep.subr.mxu0 0.0
  %1120 = vmatpush1.msra.mxu0 0.0
  %1121 = vmatprep.subr.mxu0 0.0
  %1122 = vmatpush1.msra.mxu0 0.0
  %1123 = vmatprep.subr.mxu0 0.0
  %1124 = vmatpush1.msra.mxu0 0.0
  %1125 = vmatprep.subr.mxu0 0.0
  %1126 = vmatpush1.msra.mxu0 0.0
  %1127 = vmatprep.subr.mxu0 0.0
  %1128 = vmatpush1.msra.mxu0 0.0
  %1129 = vmatprep.subr.mxu0 0.0
  %1130 = vmatpush1.msra.mxu0 0.0
  %1131 = vmatprep.subr.mxu0 0.0
  %1132 = vmatpush1.msra.mxu0 0.0
  %1133 = vmatprep.subr.mxu0 0.0
  %1134 = vmatpush1.msra.mxu0 0.0
  %1135 = vmatprep.subr.mxu0 0.0
  %1136 = vmatpush1.msra.mxu0 0.0
  %1137 = vmatprep.subr.mxu0 0.0
  %1138 = vmatpush1.msra.mxu0 0.0
  %1139 = vmatprep.subr.mxu0 0.0
  %1140 = vmatpush1.msra.mxu0 0.0
  %1141 = vmatprep.subr.mxu0 0.0
  %1142 = vmatpush1.msra.mxu0 0.0
  %1143 = vmatprep.subr.mxu0 0.0
  %1144 = vmatpush1.msra.mxu0 0.0
  %1145 = vmatprep.subr.mxu0 0.0
  %1146 = vmatpush1.msra.mxu0 0.0
  %1147 = vmatprep.subr.mxu0 0.0
  %1148 = vmatpush1.msra.mxu0 0.0
  %1149 = vmatprep.mubr.f32.mxu0 0.0
  %1150 = vmatmul.mubr.f32.gmra.mrb[0].mxu0 %v1081
  %v1151 = vpop.f32.mrb[0].mxu0
  %v1152 = vadd.f32 0.0, %v1151
  %v1153 = vpop.f32.mrb[0].mxu0
  %1154 = vmatprep.mubr.f32.mxu0 0.0
  %1155 = vmatmul.mubr.f32.gmra.mrb[0].mxu0 %v1083
  %v1156 = vpop.f32.mrb[0].mxu0
  %v1157 = vadd.f32 0.0, %v1156
  %v1158 = vpop.f32.mrb[0].mxu0
  %1159 = vdwg.mxu0
  %v1160 = vadd.f32 %v897, %v1152
  %v1161 = vadd.f32 %v902, %v1157
  %v1162 = vrot.slane %v719, 2
  %v1163 = vrot.slane %v720, 2
  %v1164 = vsel %vm146, %v1162, %v1163
  %v1165 = vsel %vm746, %v1164, 0
  %v1167 = vsel %vm746, %v1163, 0
  %1169 = vmatprep.subr.mxu0 0.0
  %1170 = vmatpush1.msra.mxu0 %v1068
  %1171 = vmatprep.subr.mxu0 0.0
  %1172 = vmatpush1.msra.mxu0 %v1069
  %1173 = vmatprep.subr.mxu0 0.0
  %1174 = vmatpush1.msra.mxu0 %v1070
  %1175 = vmatprep.subr.mxu0 0.0
  %1176 = vmatpush1.msra.mxu0 %v1071
  %1177 = vmatprep.subr.mxu0 0.0
  %1178 = vmatpush1.msra.mxu0 %v1072
  %1179 = vmatprep.subr.mxu0 0.0
  %1180 = vmatpush1.msra.mxu0 %v1073
  %1181 = vmatprep.subr.mxu0 0.0
  %1182 = vmatpush1.msra.mxu0 %v1074
  %1183 = vmatprep.subr.mxu0 0.0
  %1184 = vmatpush1.msra.mxu0 %v1075
  %1185 = vmatprep.subr.mxu0 0.0
  %1186 = vmatpush1.msra.mxu0 %v1076
  %1187 = vmatprep.subr.mxu0 0.0
  %1188 = vmatpush1.msra.mxu0 %v1077
  %1189 = vmatprep.subr.mxu0 0.0
  %1190 = vmatpush1.msra.mxu0 0.0
  %1191 = vmatprep.subr.mxu0 0.0
  %1192 = vmatpush1.msra.mxu0 0.0
  %1193 = vmatprep.subr.mxu0 0.0
  %1194 = vmatpush1.msra.mxu0 0.0
  %1195 = vmatprep.subr.mxu0 0.0
  %1196 = vmatpush1.msra.mxu0 0.0
  %1197 = vmatprep.subr.mxu0 0.0
  %1198 = vmatpush1.msra.mxu0 0.0
  %1199 = vmatprep.subr.mxu0 0.0
  %1200 = vmatpush1.msra.mxu0 0.0
  %1201 = vmatprep.subr.mxu0 0.0
  %1202 = vmatpush1.msra.mxu0 0.0
  %1203 = vmatprep.subr.mxu0 0.0
  %1204 = vmatpush1.msra.mxu0 0.0
  %1205 = vmatprep.subr.mxu0 0.0
  %1206 = vmatpush1.msra.mxu0 0.0
  %1207 = vmatprep.subr.mxu0 0.0
  %1208 = vmatpush1.msra.mxu0 0.0
  %1209 = vmatprep.subr.mxu0 0.0
  %1210 = vmatpush1.msra.mxu0 0.0
  %1211 = vmatprep.subr.mxu0 0.0
  %1212 = vmatpush1.msra.mxu0 0.0
  %1213 = vmatprep.subr.mxu0 0.0
  %1214 = vmatpush1.msra.mxu0 0.0
  %1215 = vmatprep.subr.mxu0 0.0
  %1216 = vmatpush1.msra.mxu0 0.0
  %1217 = vmatprep.subr.mxu0 0.0
  %1218 = vmatpush1.msra.mxu0 0.0
  %1219 = vmatprep.subr.mxu0 0.0
  %1220 = vmatpush1.msra.mxu0 0.0
  %1221 = vmatprep.subr.mxu0 0.0
  %1222 = vmatpush1.msra.mxu0 0.0
  %1223 = vmatprep.subr.mxu0 0.0
  %1224 = vmatpush1.msra.mxu0 0.0
  %1225 = vmatprep.subr.mxu0 0.0
  %1226 = vmatpush1.msra.mxu0 0.0
  %1227 = vmatprep.subr.mxu0 0.0
  %1228 = vmatpush1.msra.mxu0 0.0
  %1229 = vmatprep.subr.mxu0 0.0
  %1230 = vmatpush1.msra.mxu0 0.0
  %1231 = vmatprep.subr.mxu0 0.0
  %1232 = vmatpush1.msra.mxu0 0.0
  %1233 = vmatprep.mubr.f32.mxu0 0.0
  %1234 = vmatmul.mubr.f32.gmra.mrb[0].mxu0 %v1165
  %v1235 = vpop.f32.mrb[0].mxu0
  %v1236 = vadd.f32 0.0, %v1235
  %v1237 = vpop.f32.mrb[0].mxu0
  %1238 = vmatprep.mubr.f32.mxu0 0.0
  %1239 = vmatmul.mubr.f32.gmra.mrb[0].mxu0 %v1167
  %v1240 = vpop.f32.mrb[0].mxu0
  %v1241 = vadd.f32 0.0, %v1240
  %v1242 = vpop.f32.mrb[0].mxu0
  %1243 = vdwg.mxu0
  %v1244 = vadd.f32 %v1060, %v1236
  %v1245 = vadd.f32 %v1065, %v1241
  %v1246 = vld [vmem:[%s2 + $0x271] sm:$0x1]
  %v1247 = vlaneseq
  %v1248 = vshrl.u32 %v1247, 7
  %v1249 = vsub.s32 0, %v1248
  %v1250 = vrot.slane %v1246, %v1249
  %v1251 = vadd.f32 %v1160, %v1250
  %v1252 = vadd.f32 %v1161, %v1250
  %v1253 = vadd.f32 %v1244, %v1250
  %v1254 = vadd.f32 %v1245, %v1250
  %v1255 = vmax.f32 %v1251, 0.0
  %v1256 = vmax.f32 %v1252, 0.0
  %v1257 = vmax.f32 %v1253, 0.0
  %v1258 = vmax.f32 %v1254, 0.0
  %v1261 = vrot.slane %v1255, 6
  %v1262 = vrot.slane %v1256, 6
  %v1263 = vsel %vm138, %v1261, %v1262
  %v1266 = vsel %vm138, 0.0, %v1261
  %v1267 = vsel %vm146, %v1263, 0.0
  %v1270 = vrot.slane %v1257, 6
  %v1271 = vrot.slane %v1258, 6
  %v1272 = vsel %vm138, %v1270, %v1271
  %v1275 = vsel %vm138, 0.0, %v1270
  %v1276 = vsel %vm146, %v1272, 0.0
  %v1277 = vld [vmem:[%s2 + $0x150] sm:$0xff]
  %v1278 = vld [vmem:[%s2 + $0x158] sm:$0xff]
  %v1279 = vld [vmem:[%s2 + $0x160] sm:$0xff]
  %v1280 = vld [vmem:[%s2 + $0x168] sm:$0xff]
  %v1281 = vld [vmem:[%s2 + $0x170] sm:$0xff]
  %v1282 = vld [vmem:[%s2 + $0x178] sm:$0xff]
  %v1283 = vld [vmem:[%s2 + $0x180] sm:$0xff]
  %v1284 = vld [vmem:[%s2 + $0x188] sm:$0xff]
  %v1285 = vld [vmem:[%s2 + $0x190] sm:$0xff]
  %v1286 = vld [vmem:[%s2 + $0x198] sm:$0xff]
  %v1287 = vld [vmem:[%s2 + $0x1a0] sm:$0xff]
  %v1288 = vld [vmem:[%s2 + $0x1a8] sm:$0xff]
  %v1289 = vld [vmem:[%s2 + $0x1b0] sm:$0xff]
  %v1290 = vld [vmem:[%s2 + $0x1b8] sm:$0xff]
  %v1291 = vld [vmem:[%s2 + $0x1c0] sm:$0xff]
  %v1292 = vld [vmem:[%s2 + $0x1c8] sm:$0xff]
  %v1293 = vld [vmem:[%s2 + $0x1d0] sm:$0xff]
  %v1294 = vld [vmem:[%s2 + $0x1d8] sm:$0xff]
  %v1295 = vld [vmem:[%s2 + $0x1e0] sm:$0xff]
  %v1296 = vld [vmem:[%s2 + $0x1e8] sm:$0xff]
  %v1297 = vld [vmem:[%s2 + $0x1f0] sm:$0xff]
  %v1298 = vld [vmem:[%s2 + $0x1f8] sm:$0xff]
  %v1299 = vld [vmem:[%s2 + $0x200] sm:$0xff]
  %v1300 = vld [vmem:[%s2 + $0x208] sm:$0xff]
  %v1303 = vrot.slane %v1266, 1
  %v1304 = vrot.slane %v1267, 1
  %v1305 = vsel %vm148, %v1303, %v1304
  %vm1306 = vcmask 785408
  %v1307 = vsel %vm1306, %v1305, 0
  %v1309 = vsel %vm1306, %v1304, 0
  %1311 = vmatprep.subr.mxu0 0.0
  %1312 = vmatpush1.msra.mxu0 %v1289
  %1313 = vmatprep.subr.mxu0 0.0
  %1314 = vmatpush1.msra.mxu0 %v1290
  %1315 = vmatprep.subr.mxu0 0.0
  %1316 = vmatpush1.msra.mxu0 %v1291
  %1317 = vmatprep.subr.mxu0 0.0
  %1318 = vmatpush1.msra.mxu0 %v1292
  %1319 = vmatprep.subr.mxu0 0.0
  %1320 = vmatpush1.msra.mxu0 %v1293
  %1321 = vmatprep.subr.mxu0 0.0
  %1322 = vmatpush1.msra.mxu0 %v1294
  %1323 = vmatprep.subr.mxu0 0.0
  %1324 = vmatpush1.msra.mxu0 %v1295
  %1325 = vmatprep.subr.mxu0 0.0
  %1326 = vmatpush1.msra.mxu0 %v1296
  %1327 = vmatprep.subr.mxu0 0.0
  %1328 = vmatpush1.msra.mxu0 %v1297
  %1329 = vmatprep.subr.mxu0 0.0
  %1330 = vmatpush1.msra.mxu0 %v1298
  %1331 = vmatprep.subr.mxu0 0.0
  %1332 = vmatpush1.msra.mxu0 %v1299
  %1333 = vmatprep.subr.mxu0 0.0
  %1334 = vmatpush1.msra.mxu0 %v1300
  %1335 = vmatprep.subr.mxu0 0.0
  %1336 = vmatpush1.msra.mxu0 0.0
  %1337 = vmatprep.subr.mxu0 0.0
  %1338 = vmatpush1.msra.mxu0 0.0
  %1339 = vmatprep.subr.mxu0 0.0
  %1340 = vmatpush1.msra.mxu0 0.0
  %1341 = vmatprep.subr.mxu0 0.0
  %1342 = vmatpush1.msra.mxu0 0.0
  %1343 = vmatprep.subr.mxu0 0.0
  %1344 = vmatpush1.msra.mxu0 0.0
  %1345 = vmatprep.subr.mxu0 0.0
  %1346 = vmatpush1.msra.mxu0 0.0
  %1347 = vmatprep.subr.mxu0 0.0
  %1348 = vmatpush1.msra.mxu0 0.0
  %1349 = vmatprep.subr.mxu0 0.0
  %1350 = vmatpush1.msra.mxu0 0.0
  %1351 = vmatprep.subr.mxu0 0.0
  %1352 = vmatpush1.msra.mxu0 0.0
  %1353 = vmatprep.subr.mxu0 0.0
  %1354 = vmatpush1.msra.mxu0 0.0
  %1355 = vmatprep.subr.mxu0 0.0
  %1356 = vmatpush1.msra.mxu0 0.0
  %1357 = vmatprep.subr.mxu0 0.0
  %1358 = vmatpush1.msra.mxu0 0.0
  %1359 = vmatprep.subr.mxu0 0.0
  %1360 = vmatpush1.msra.mxu0 0.0
  %1361 = vmatprep.subr.mxu0 0.0
  %1362 = vmatpush1.msra.mxu0 0.0
  %1363 = vmatprep.subr.mxu0 0.0
  %1364 = vmatpush1.msra.mxu0 0.0
  %1365 = vmatprep.subr.mxu0 0.0
  %1366 = vmatpush1.msra.mxu0 0.0
  %1367 = vmatprep.subr.mxu0 0.0
  %1368 = vmatpush1.msra.mxu0 0.0
  %1369 = vmatprep.subr.mxu0 0.0
  %1370 = vmatpush1.msra.mxu0 0.0
  %1371 = vmatprep.subr.mxu0 0.0
  %1372 = vmatpush1.msra.mxu0 0.0
  %1373 = vmatprep.subr.mxu0 0.0
  %1374 = vmatpush1.msra.mxu0 0.0
  %1375 = vmatprep.mubr.f32.mxu0 0.0
  %1376 = vmatmul.mubr.f32.gmra.mrb[0].mxu0 %v1307
  %v1377 = vpop.f32.mrb[0].mxu0
  %v1378 = vadd.f32 0.0, %v1377
  %v1379 = vpop.f32.mrb[0].mxu0
  %1380 = vmatprep.mubr.f32.mxu0 0.0
  %1381 = vmatmul.mubr.f32.gmra.mrb[0].mxu0 %v1309
  %v1382 = vpop.f32.mrb[0].mxu0
  %v1383 = vadd.f32 0.0, %v1382
  %v1384 = vpop.f32.mrb[0].mxu0
  %1385 = vdwg.mxu0
  %v1386 = vsel %vm1306, %v1266, 0
  %v1388 = vsel %vm1306, %v1267, 0
  %1390 = vmatprep.subr.mxu0 0.0
  %1391 = vmatpush1.msra.mxu0 %v1277
  %1392 = vmatprep.subr.mxu0 0.0
  %1393 = vmatpush1.msra.mxu0 %v1278
  %1394 = vmatprep.subr.mxu0 0.0
  %1395 = vmatpush1.msra.mxu0 %v1279
  %1396 = vmatprep.subr.mxu0 0.0
  %1397 = vmatpush1.msra.mxu0 %v1280
  %1398 = vmatprep.subr.mxu0 0.0
  %1399 = vmatpush1.msra.mxu0 %v1281
  %1400 = vmatprep.subr.mxu0 0.0
  %1401 = vmatpush1.msra.mxu0 %v1282
  %1402 = vmatprep.subr.mxu0 0.0
  %1403 = vmatpush1.msra.mxu0 %v1283
  %1404 = vmatprep.subr.mxu0 0.0
  %1405 = vmatpush1.msra.mxu0 %v1284
  %1406 = vmatprep.subr.mxu0 0.0
  %1407 = vmatpush1.msra.mxu0 %v1285
  %1408 = vmatprep.subr.mxu0 0.0
  %1409 = vmatpush1.msra.mxu0 %v1286
  %1410 = vmatprep.subr.mxu0 0.0
  %1411 = vmatpush1.msra.mxu0 %v1287
  %1412 = vmatprep.subr.mxu0 0.0
  %1413 = vmatpush1.msra.mxu0 %v1288
  %1414 = vmatprep.subr.mxu0 0.0
  %1415 = vmatpush1.msra.mxu0 0.0
  %1416 = vmatprep.subr.mxu0 0.0
  %1417 = vmatpush1.msra.mxu0 0.0
  %1418 = vmatprep.subr.mxu0 0.0
  %1419 = vmatpush1.msra.mxu0 0.0
  %1420 = vmatprep.subr.mxu0 0.0
  %1421 = vmatpush1.msra.mxu0 0.0
  %1422 = vmatprep.subr.mxu0 0.0
  %1423 = vmatpush1.msra.mxu0 0.0
  %1424 = vmatprep.subr.mxu0 0.0
  %1425 = vmatpush1.msra.mxu0 0.0
  %1426 = vmatprep.subr.mxu0 0.0
  %1427 = vmatpush1.msra.mxu0 0.0
  %1428 = vmatprep.subr.mxu0 0.0
  %1429 = vmatpush1.msra.mxu0 0.0
  %1430 = vmatprep.subr.mxu0 0.0
  %1431 = vmatpush1.msra.mxu0 0.0
  %1432 = vmatprep.subr.mxu0 0.0
  %1433 = vmatpush1.msra.mxu0 0.0
  %1434 = vmatprep.subr.mxu0 0.0
  %1435 = vmatpush1.msra.mxu0 0.0
  %1436 = vmatprep.subr.mxu0 0.0
  %1437 = vmatpush1.msra.mxu0 0.0
  %1438 = vmatprep.subr.mxu0 0.0
  %1439 = vmatpush1.msra.mxu0 0.0
  %1440 = vmatprep.subr.mxu0 0.0
  %1441 = vmatpush1.msra.mxu0 0.0
  %1442 = vmatprep.subr.mxu0 0.0
  %1443 = vmatpush1.msra.mxu0 0.0
  %1444 = vmatprep.subr.mxu0 0.0
  %1445 = vmatpush1.msra.mxu0 0.0
  %1446 = vmatprep.subr.mxu0 0.0
  %1447 = vmatpush1.msra.mxu0 0.0
  %1448 = vmatprep.subr.mxu0 0.0
  %1449 = vmatpush1.msra.mxu0 0.0
  %1450 = vmatprep.subr.mxu0 0.0
  %1451 = vmatpush1.msra.mxu0 0.0
  %1452 = vmatprep.subr.mxu0 0.0
  %1453 = vmatpush1.msra.mxu0 0.0
  %1454 = vmatprep.mubr.f32.mxu0 0.0
  %1455 = vmatmul.mubr.f32.gmra.mrb[0].mxu0 %v1386
  %v1456 = vpop.f32.mrb[0].mxu0
  %v1457 = vadd.f32 %v1378, %v1456
  %v1458 = vpop.f32.mrb[0].mxu0
  %1459 = vmatprep.mubr.f32.mxu0 0.0
  %1460 = vmatmul.mubr.f32.gmra.mrb[0].mxu0 %v1388
  %v1461 = vpop.f32.mrb[0].mxu0
  %v1462 = vadd.f32 %v1383, %v1461
  %v1463 = vpop.f32.mrb[0].mxu0
  %1464 = vdwg.mxu0
  %v1467 = vrot.slane %v1275, 1
  %v1468 = vrot.slane %v1276, 1
  %v1469 = vsel %vm148, %v1467, %v1468
  %v1470 = vsel %vm1306, %v1469, 0
  %v1472 = vsel %vm1306, %v1468, 0
  %1474 = vmatprep.subr.mxu0 0.0
  %1475 = vmatpush1.msra.mxu0 %v1289
  %1476 = vmatprep.subr.mxu0 0.0
  %1477 = vmatpush1.msra.mxu0 %v1290
  %1478 = vmatprep.subr.mxu0 0.0
  %1479 = vmatpush1.msra.mxu0 %v1291
  %1480 = vmatprep.subr.mxu0 0.0
  %1481 = vmatpush1.msra.mxu0 %v1292
  %1482 = vmatprep.subr.mxu0 0.0
  %1483 = vmatpush1.msra.mxu0 %v1293
  %1484 = vmatprep.subr.mxu0 0.0
  %1485 = vmatpush1.msra.mxu0 %v1294
  %1486 = vmatprep.subr.mxu0 0.0
  %1487 = vmatpush1.msra.mxu0 %v1295
  %1488 = vmatprep.subr.mxu0 0.0
  %1489 = vmatpush1.msra.mxu0 %v1296
  %1490 = vmatprep.subr.mxu0 0.0
  %1491 = vmatpush1.msra.mxu0 %v1297
  %1492 = vmatprep.subr.mxu0 0.0
  %1493 = vmatpush1.msra.mxu0 %v1298
  %1494 = vmatprep.subr.mxu0 0.0
  %1495 = vmatpush1.msra.mxu0 %v1299
  %1496 = vmatprep.subr.mxu0 0.0
  %1497 = vmatpush1.msra.mxu0 %v1300
  %1498 = vmatprep.subr.mxu0 0.0
  %1499 = vmatpush1.msra.mxu0 0.0
  %1500 = vmatprep.subr.mxu0 0.0
  %1501 = vmatpush1.msra.mxu0 0.0
  %1502 = vmatprep.subr.mxu0 0.0
  %1503 = vmatpush1.msra.mxu0 0.0
  %1504 = vmatprep.subr.mxu0 0.0
  %1505 = vmatpush1.msra.mxu0 0.0
  %1506 = vmatprep.subr.mxu0 0.0
  %1507 = vmatpush1.msra.mxu0 0.0
  %1508 = vmatprep.subr.mxu0 0.0
  %1509 = vmatpush1.msra.mxu0 0.0
  %1510 = vmatprep.subr.mxu0 0.0
  %1511 = vmatpush1.msra.mxu0 0.0
  %1512 = vmatprep.subr.mxu0 0.0
  %1513 = vmatpush1.msra.mxu0 0.0
  %1514 = vmatprep.subr.mxu0 0.0
  %1515 = vmatpush1.msra.mxu0 0.0
  %1516 = vmatprep.subr.mxu0 0.0
  %1517 = vmatpush1.msra.mxu0 0.0
  %1518 = vmatprep.subr.mxu0 0.0
  %1519 = vmatpush1.msra.mxu0 0.0
  %1520 = vmatprep.subr.mxu0 0.0
  %1521 = vmatpush1.msra.mxu0 0.0
  %1522 = vmatprep.subr.mxu0 0.0
  %1523 = vmatpush1.msra.mxu0 0.0
  %1524 = vmatprep.subr.mxu0 0.0
  %1525 = vmatpush1.msra.mxu0 0.0
  %1526 = vmatprep.subr.mxu0 0.0
  %1527 = vmatpush1.msra.mxu0 0.0
  %1528 = vmatprep.subr.mxu0 0.0
  %1529 = vmatpush1.msra.mxu0 0.0
  %1530 = vmatprep.subr.mxu0 0.0
  %1531 = vmatpush1.msra.mxu0 0.0
  %1532 = vmatprep.subr.mxu0 0.0
  %1533 = vmatpush1.msra.mxu0 0.0
  %1534 = vmatprep.subr.mxu0 0.0
  %1535 = vmatpush1.msra.mxu0 0.0
  %1536 = vmatprep.subr.mxu0 0.0
  %1537 = vmatpush1.msra.mxu0 0.0
  %1538 = vmatprep.mubr.f32.mxu0 0.0
  %1539 = vmatmul.mubr.f32.gmra.mrb[0].mxu0 %v1470
  %v1540 = vpop.f32.mrb[0].mxu0
  %v1541 = vadd.f32 0.0, %v1540
  %v1542 = vpop.f32.mrb[0].mxu0
  %1543 = vmatprep.mubr.f32.mxu0 0.0
  %1544 = vmatmul.mubr.f32.gmra.mrb[0].mxu0 %v1472
  %v1545 = vpop.f32.mrb[0].mxu0
  %v1546 = vadd.f32 0.0, %v1545
  %v1547 = vpop.f32.mrb[0].mxu0
  %1548 = vdwg.mxu0
  %v1549 = vsel %vm1306, %v1275, 0
  %v1551 = vsel %vm1306, %v1276, 0
  %1553 = vmatprep.subr.mxu0 0.0
  %1554 = vmatpush1.msra.mxu0 %v1277
  %1555 = vmatprep.subr.mxu0 0.0
  %1556 = vmatpush1.msra.mxu0 %v1278
  %1557 = vmatprep.subr.mxu0 0.0
  %1558 = vmatpush1.msra.mxu0 %v1279
  %1559 = vmatprep.subr.mxu0 0.0
  %1560 = vmatpush1.msra.mxu0 %v1280
  %1561 = vmatprep.subr.mxu0 0.0
  %1562 = vmatpush1.msra.mxu0 %v1281
  %1563 = vmatprep.subr.mxu0 0.0
  %1564 = vmatpush1.msra.mxu0 %v1282
  %1565 = vmatprep.subr.mxu0 0.0
  %1566 = vmatpush1.msra.mxu0 %v1283
  %1567 = vmatprep.subr.mxu0 0.0
  %1568 = vmatpush1.msra.mxu0 %v1284
  %1569 = vmatprep.subr.mxu0 0.0
  %1570 = vmatpush1.msra.mxu0 %v1285
  %1571 = vmatprep.subr.mxu0 0.0
  %1572 = vmatpush1.msra.mxu0 %v1286
  %1573 = vmatprep.subr.mxu0 0.0
  %1574 = vmatpush1.msra.mxu0 %v1287
  %1575 = vmatprep.subr.mxu0 0.0
  %1576 = vmatpush1.msra.mxu0 %v1288
  %1577 = vmatprep.subr.mxu0 0.0
  %1578 = vmatpush1.msra.mxu0 0.0
  %1579 = vmatprep.subr.mxu0 0.0
  %1580 = vmatpush1.msra.mxu0 0.0
  %1581 = vmatprep.subr.mxu0 0.0
  %1582 = vmatpush1.msra.mxu0 0.0
  %1583 = vmatprep.subr.mxu0 0.0
  %1584 = vmatpush1.msra.mxu0 0.0
  %1585 = vmatprep.subr.mxu0 0.0
  %1586 = vmatpush1.msra.mxu0 0.0
  %1587 = vmatprep.subr.mxu0 0.0
  %1588 = vmatpush1.msra.mxu0 0.0
  %1589 = vmatprep.subr.mxu0 0.0
  %1590 = vmatpush1.msra.mxu0 0.0
  %1591 = vmatprep.subr.mxu0 0.0
  %1592 = vmatpush1.msra.mxu0 0.0
  %1593 = vmatprep.subr.mxu0 0.0
  %1594 = vmatpush1.msra.mxu0 0.0
  %1595 = vmatprep.subr.mxu0 0.0
  %1596 = vmatpush1.msra.mxu0 0.0
  %1597 = vmatprep.subr.mxu0 0.0
  %1598 = vmatpush1.msra.mxu0 0.0
  %1599 = vmatprep.subr.mxu0 0.0
  %1600 = vmatpush1.msra.mxu0 0.0
  %1601 = vmatprep.subr.mxu0 0.0
  %1602 = vmatpush1.msra.mxu0 0.0
  %1603 = vmatprep.subr.mxu0 0.0
  %1604 = vmatpush1.msra.mxu0 0.0
  %1605 = vmatprep.subr.mxu0 0.0
  %1606 = vmatpush1.msra.mxu0 0.0
  %1607 = vmatprep.subr.mxu0 0.0
  %1608 = vmatpush1.msra.mxu0 0.0
  %1609 = vmatprep.subr.mxu0 0.0
  %1610 = vmatpush1.msra.mxu0 0.0
  %1611 = vmatprep.subr.mxu0 0.0
  %1612 = vmatpush1.msra.mxu0 0.0
  %1613 = vmatprep.subr.mxu0 0.0
  %1614 = vmatpush1.msra.mxu0 0.0
  %1615 = vmatprep.subr.mxu0 0.0
  %1616 = vmatpush1.msra.mxu0 0.0
  %1617 = vmatprep.mubr.f32.mxu0 0.0
  %1618 = vmatmul.mubr.f32.gmra.mrb[0].mxu0 %v1549
  %v1619 = vpop.f32.mrb[0].mxu0
  %v1620 = vadd.f32 %v1541, %v1619
  %v1621 = vpop.f32.mrb[0].mxu0
  %1622 = vmatprep.mubr.f32.mxu0 0.0
  %1623 = vmatmul.mubr.f32.gmra.mrb[0].mxu0 %v1551
  %v1624 = vpop.f32.mrb[0].mxu0
  %v1625 = vadd.f32 %v1546, %v1624
  %v1626 = vpop.f32.mrb[0].mxu0
  %1627 = vdwg.mxu0
  %v1628 = vld [vmem:[%s2 + $0x210] sm:$0xff]
  %v1629 = vld [vmem:[%s2 + $0x218] sm:$0xff]
  %v1630 = vld [vmem:[%s2 + $0x220] sm:$0xff]
  %v1631 = vld [vmem:[%s2 + $0x228] sm:$0xff]
  %v1632 = vld [vmem:[%s2 + $0x230] sm:$0xff]
  %v1633 = vld [vmem:[%s2 + $0x238] sm:$0xff]
  %v1634 = vld [vmem:[%s2 + $0x240] sm:$0xff]
  %v1635 = vld [vmem:[%s2 + $0x248] sm:$0xff]
  %v1636 = vld [vmem:[%s2 + $0x250] sm:$0xff]
  %v1637 = vld [vmem:[%s2 + $0x258] sm:$0xff]
  %v1638 = vld [vmem:[%s2 + $0x260] sm:$0xff]
  %v1639 = vld [vmem:[%s2 + $0x268] sm:$0xff]
  %v1640 = vrot.slane %v1266, 2
  %v1641 = vrot.slane %v1267, 2
  %v1642 = vsel %vm146, %v1640, %v1641
  %v1643 = vsel %vm1306, %v1642, 0
  %v1645 = vsel %vm1306, %v1641, 0
  %1647 = vmatprep.subr.mxu0 0.0
  %1648 = vmatpush1.msra.mxu0 %v1628
  %1649 = vmatprep.subr.mxu0 0.0
  %1650 = vmatpush1.msra.mxu0 %v1629
  %1651 = vmatprep.subr.mxu0 0.0
  %1652 = vmatpush1.msra.mxu0 %v1630
  %1653 = vmatprep.subr.mxu0 0.0
  %1654 = vmatpush1.msra.mxu0 %v1631
  %1655 = vmatprep.subr.mxu0 0.0
  %1656 = vmatpush1.msra.mxu0 %v1632
  %1657 = vmatprep.subr.mxu0 0.0
  %1658 = vmatpush1.msra.mxu0 %v1633
  %1659 = vmatprep.subr.mxu0 0.0
  %1660 = vmatpush1.msra.mxu0 %v1634
  %1661 = vmatprep.subr.mxu0 0.0
  %1662 = vmatpush1.msra.mxu0 %v1635
  %1663 = vmatprep.subr.mxu0 0.0
  %1664 = vmatpush1.msra.mxu0 %v1636
  %1665 = vmatprep.subr.mxu0 0.0
  %1666 = vmatpush1.msra.mxu0 %v1637
  %1667 = vmatprep.subr.mxu0 0.0
  %1668 = vmatpush1.msra.mxu0 %v1638
  %1669 = vmatprep.subr.mxu0 0.0
  %1670 = vmatpush1.msra.mxu0 %v1639
  %1671 = vmatprep.subr.mxu0 0.0
  %1672 = vmatpush1.msra.mxu0 0.0
  %1673 = vmatprep.subr.mxu0 0.0
  %1674 = vmatpush1.msra.mxu0 0.0
  %1675 = vmatprep.subr.mxu0 0.0
  %1676 = vmatpush1.msra.mxu0 0.0
  %1677 = vmatprep.subr.mxu0 0.0
  %1678 = vmatpush1.msra.mxu0 0.0
  %1679 = vmatprep.subr.mxu0 0.0
  %1680 = vmatpush1.msra.mxu0 0.0
  %1681 = vmatprep.subr.mxu0 0.0
  %1682 = vmatpush1.msra.mxu0 0.0
  %1683 = vmatprep.subr.mxu0 0.0
  %1684 = vmatpush1.msra.mxu0 0.0
  %1685 = vmatprep.subr.mxu0 0.0
  %1686 = vmatpush1.msra.mxu0 0.0
  %1687 = vmatprep.subr.mxu0 0.0
  %1688 = vmatpush1.msra.mxu0 0.0
  %1689 = vmatprep.subr.mxu0 0.0
  %1690 = vmatpush1.msra.mxu0 0.0
  %1691 = vmatprep.subr.mxu0 0.0
  %1692 = vmatpush1.msra.mxu0 0.0
  %1693 = vmatprep.subr.mxu0 0.0
  %1694 = vmatpush1.msra.mxu0 0.0
  %1695 = vmatprep.subr.mxu0 0.0
  %1696 = vmatpush1.msra.mxu0 0.0
  %1697 = vmatprep.subr.mxu0 0.0
  %1698 = vmatpush1.msra.mxu0 0.0
  %1699 = vmatprep.subr.mxu0 0.0
  %1700 = vmatpush1.msra.mxu0 0.0
  %1701 = vmatprep.subr.mxu0 0.0
  %1702 = vmatpush1.msra.mxu0 0.0
  %1703 = vmatprep.subr.mxu0 0.0
  %1704 = vmatpush1.msra.mxu0 0.0
  %1705 = vmatprep.subr.mxu0 0.0
  %1706 = vmatpush1.msra.mxu0 0.0
  %1707 = vmatprep.subr.mxu0 0.0
  %1708 = vmatpush1.msra.mxu0 0.0
  %1709 = vmatprep.subr.mxu0 0.0
  %1710 = vmatpush1.msra.mxu0 0.0
  %1711 = vmatprep.mubr.f32.mxu0 0.0
  %1712 = vmatmul.mubr.f32.gmra.mrb[0].mxu0 %v1643
  %v1713 = vpop.f32.mrb[0].mxu0
  %v1714 = vadd.f32 0.0, %v1713
  %v1715 = vpop.f32.mrb[0].mxu0
  %1716 = vmatprep.mubr.f32.mxu0 0.0
  %1717 = vmatmul.mubr.f32.gmra.mrb[0].mxu0 %v1645
  %v1718 = vpop.f32.mrb[0].mxu0
  %v1719 = vadd.f32 0.0, %v1718
  %v1720 = vpop.f32.mrb[0].mxu0
  %1721 = vdwg.mxu0
  %v1722 = vadd.f32 %v1457, %v1714
  %v1723 = vadd.f32 %v1462, %v1719
  %v1724 = vrot.slane %v1275, 2
  %v1725 = vrot.slane %v1276, 2
  %v1726 = vsel %vm146, %v1724, %v1725
  %v1727 = vsel %vm1306, %v1726, 0
  %v1729 = vsel %vm1306, %v1725, 0
  %1731 = vmatprep.subr.mxu0 0.0
  %1732 = vmatpush1.msra.mxu0 %v1628
  %1733 = vmatprep.subr.mxu0 0.0
  %1734 = vmatpush1.msra.mxu0 %v1629
  %1735 = vmatprep.subr.mxu0 0.0
  %1736 = vmatpush1.msra.mxu0 %v1630
  %1737 = vmatprep.subr.mxu0 0.0
  %1738 = vmatpush1.msra.mxu0 %v1631
  %1739 = vmatprep.subr.mxu0 0.0
  %1740 = vmatpush1.msra.mxu0 %v1632
  %1741 = vmatprep.subr.mxu0 0.0
  %1742 = vmatpush1.msra.mxu0 %v1633
  %1743 = vmatprep.subr.mxu0 0.0
  %1744 = vmatpush1.msra.mxu0 %v1634
  %1745 = vmatprep.subr.mxu0 0.0
  %1746 = vmatpush1.msra.mxu0 %v1635
  %1747 = vmatprep.subr.mxu0 0.0
  %1748 = vmatpush1.msra.mxu0 %v1636
  %1749 = vmatprep.subr.mxu0 0.0
  %1750 = vmatpush1.msra.mxu0 %v1637
  %1751 = vmatprep.subr.mxu0 0.0
  %1752 = vmatpush1.msra.mxu0 %v1638
  %1753 = vmatprep.subr.mxu0 0.0
  %1754 = vmatpush1.msra.mxu0 %v1639
  %1755 = vmatprep.subr.mxu0 0.0
  %1756 = vmatpush1.msra.mxu0 0.0
  %1757 = vmatprep.subr.mxu0 0.0
  %1758 = vmatpush1.msra.mxu0 0.0
  %1759 = vmatprep.subr.mxu0 0.0
  %1760 = vmatpush1.msra.mxu0 0.0
  %1761 = vmatprep.subr.mxu0 0.0
  %1762 = vmatpush1.msra.mxu0 0.0
  %1763 = vmatprep.subr.mxu0 0.0
  %1764 = vmatpush1.msra.mxu0 0.0
  %1765 = vmatprep.subr.mxu0 0.0
  %1766 = vmatpush1.msra.mxu0 0.0
  %1767 = vmatprep.subr.mxu0 0.0
  %1768 = vmatpush1.msra.mxu0 0.0
  %1769 = vmatprep.subr.mxu0 0.0
  %1770 = vmatpush1.msra.mxu0 0.0
  %1771 = vmatprep.subr.mxu0 0.0
  %1772 = vmatpush1.msra.mxu0 0.0
  %1773 = vmatprep.subr.mxu0 0.0
  %1774 = vmatpush1.msra.mxu0 0.0
  %1775 = vmatprep.subr.mxu0 0.0
  %1776 = vmatpush1.msra.mxu0 0.0
  %1777 = vmatprep.subr.mxu0 0.0
  %1778 = vmatpush1.msra.mxu0 0.0
  %1779 = vmatprep.subr.mxu0 0.0
  %1780 = vmatpush1.msra.mxu0 0.0
  %1781 = vmatprep.subr.mxu0 0.0
  %1782 = vmatpush1.msra.mxu0 0.0
  %1783 = vmatprep.subr.mxu0 0.0
  %1784 = vmatpush1.msra.mxu0 0.0
  %1785 = vmatprep.subr.mxu0 0.0
  %1786 = vmatpush1.msra.mxu0 0.0
  %1787 = vmatprep.subr.mxu0 0.0
  %1788 = vmatpush1.msra.mxu0 0.0
  %1789 = vmatprep.subr.mxu0 0.0
  %1790 = vmatpush1.msra.mxu0 0.0
  %1791 = vmatprep.subr.mxu0 0.0
  %1792 = vmatpush1.msra.mxu0 0.0
  %1793 = vmatprep.subr.mxu0 0.0
  %1794 = vmatpush1.msra.mxu0 0.0
  %1795 = vmatprep.mubr.f32.mxu0 0.0
  %1796 = vmatmul.mubr.f32.gmra.mrb[0].mxu0 %v1727
  %v1797 = vpop.f32.mrb[0].mxu0
  %v1798 = vadd.f32 0.0, %v1797
  %v1799 = vpop.f32.mrb[0].mxu0
  %1800 = vmatprep.mubr.f32.mxu0 0.0
  %1801 = vmatmul.mubr.f32.gmra.mrb[0].mxu0 %v1729
  %v1802 = vpop.f32.mrb[0].mxu0
  %v1803 = vadd.f32 0.0, %v1802
  %v1804 = vpop.f32.mrb[0].mxu0
  %1805 = vdwg.mxu0
  %v1806 = vadd.f32 %v1620, %v1798
  %v1807 = vadd.f32 %v1625, %v1803
  %v1808 = vld [vmem:[%s2 + $0x272] sm:$0x1]
  %v1809 = vlaneseq
  %v1810 = vshrl.u32 %v1809, 7
  %v1811 = vsub.s32 0, %v1810
  %v1812 = vrot.slane %v1808, %v1811
  %v1813 = vadd.f32 %v1722, %v1812
  %v1814 = vadd.f32 %v1723, %v1812
  %v1815 = vadd.f32 %v1806, %v1812
  %v1816 = vadd.f32 %v1807, %v1812
  %vm1817 = vcmask 113664
  %1818 = vst.msk [vmem:[%s3] sm:$0xff] %vm1817, %v1813
  %vm1819 = vcmask 111616
  %1820 = vst.msk [vmem:[%s3 + $0x8] sm:$0x3f] %vm1819, %v1814
  %1821 = vst.msk [vmem:[%s3 + $0x10] sm:$0xff] %vm1817, %v1815
  %1822 = vst.msk [vmem:[%s3 + $0x18] sm:$0x3f] %vm1819, %v1816
  // Predicated region
  $region14: #{forward.1} parent=0 // pred_check
    _
  $region15: #{forward.1} parent=0 // pred_check_branch
    %1824 = sbr.rel (0) target = $region17
  $region16: #{forward.1} parent=0 // pred_region
    _
  $region17: #{forward.1} parent=0 // pred_fallthru
    _
  // Predicated region
  $region18: #{forward.1} parent=0 // pred_check
    _
  $region19: #{forward.1} parent=0 // pred_check_branch
    %1826 = sbr.rel (0) target = $region21
  $region20: #{forward.1} parent=0 // pred_region
    _
  $region21: #{forward.1} parent=0 // pred_fallthru
    _

</llo_original>
